<compile_context>
chip_gen: v7x
topology: tpu7x:2x2x1
jax: 0.10.0
libtpu: 0.0.40
codegen_flags: <defaults>
</compile_context>

<pallas_src>
import jax
import jax.numpy as jnp
from jax import lax
from jax.experimental import pallas as pl
from jax.experimental.pallas import tpu as pltpu


def _round_up(x, m):
    return ((x + m - 1) // m) * m


def _vmem_capacity_bytes():
    try:
        cap = getattr(pltpu.get_tpu_info(), "vmem_capacity_bytes", None)
        if cap:
            return int(cap)
    except Exception:
        pass
    return 64 * 1024 * 1024          # conservative default: v7x per-core VMEM


def _pick_block(batch, s_row, s_col, hdim, a_pad, r_pad, r1_pad, n_rels_pad, w_total):
    """Choose (sentences/step, relations/step, vmem_limit) per TPU generation."""
    f32b, bf16b = 4, 2
    cap = _vmem_capacity_bytes()
    budget = int(0.72 * cap)
    two_cores = cap <= 80 * 1024 * 1024      # 64 MiB/TC => v7x-class (2 TCs/chip)

    def est(bt, rg):
        m_col, m_row = bt * s_col, bt * s_row
        io = 2 * (m_col * hdim * bf16b + bt * s_col * f32b
                  + bt * s_row * s_col * f32b
                  + bt * s_row * rg * s_col * bf16b)
        wts = 2 * (hdim * w_total * bf16b + w_total * f32b
                   + a_pad * a_pad * bf16b + a_pad * f32b
                   + r_pad * rg * r1_pad * bf16b + rg * r1_pad * f32b)
        scr = m_col * w_total * bf16b
        tmp = (m_col * w_total * (f32b + bf16b)       # fused MLP out (f32 + bf16)
               + m_row * a_pad * (f32b + bf16b)       # t_arc
               + bt * s_row * s_col * f32b            # s_arc temp
               + m_row * rg * r1_pad * (f32b + bf16b) # T
               + bt * s_row * rg * s_col * f32b)      # rel result before bf16 cast
        return io + wts + scr + tmp

    bt = max(1, min(batch, max(1, 4096 // s_col)))    # let big-VMEM chips grow Bt
    rg = n_rels_pad
    while bt > 1 and est(bt, rg) > budget:
        bt -= 1
    # Hard VMEM guarantee (v7x 64 MiB): tile relations when a Bt=1 block is too big.
    while rg > 8 and est(bt, rg) > budget:
        divs = [d for d in range(8, rg, 8) if n_rels_pad % d == 0]
        if not divs:
            break
        rg = max(divs)
    # TODO(synk): extremely long sequences could still exceed the budget at Bt=1,
    # rg=8; a third grid axis over dep rows would be needed for that regime.
    if two_cores and batch >= 2:
        bt = min(bt, (batch + 1) // 2)   # keep >= 2 parallel batch steps for 2 TCs
    vmem_limit = int(min(cap - 4 * 1024 * 1024,
                         max(32 * 1024 * 1024, int(est(bt, rg) * 1.4))))
    return bt, rg, vmem_limit


def _biaffine_kernel(x_ref, mask_ref, w_mlp_ref, b_mlp_ref,
                     w_arc_core_ref, arc_bias_ref,
                     w_rel_left_ref, rel_bias_ref,
                     s_arc_ref, s_rel_ref, h_scr):
    """Grid = (batch blocks, relation groups). g==0 computes MLPs + arc scores."""
    g = pl.program_id(1)
    bt, s_col, hdim = x_ref.shape
    s_row = s_arc_ref.shape[1]
    a_pad = w_arc_core_ref.shape[0]
    r_pad = w_rel_left_ref.shape[0]
    rg = s_rel_ref.shape[2]
    r1_pad = w_rel_left_ref.shape[1] // rg
    w_total = w_mlp_ref.shape[1]
    off_rd = 2 * a_pad
    off_rh = 2 * a_pad + r_pad
    f32 = jnp.float32
    bf16 = jnp.bfloat16
    bdims = (((2,), (2,)), ((0,), (0,)))      # contract last dims, batch dim 0

    @pl.when(g == 0)
    def _():
        # Fused 4-way MLP: Linear + LeakyReLU(0.1); dropout = identity (eval mode).
        x2 = x_ref[...].reshape(bt * s_col, hdim)
        hh = jnp.dot(x2, w_mlp_ref[...], preferred_element_type=f32) + b_mlp_ref[...]
        h3 = jnp.where(hh > 0, hh, 0.1 * hh).astype(bf16).reshape(bt, s_col, w_total)
        h_scr[...] = h3                       # reused by every relation group

        # --- arc biaffine (bias_x=True, bias_y=False, n_out=1) ---
        arc_d = h3[:, :s_row, :a_pad].reshape(bt * s_row, a_pad)
        arc_h = h3[:, :, a_pad:2 * a_pad]     # (Bt, S_col, A_pad)
        t = jnp.dot(arc_d, w_arc_core_ref[...], preferred_element_type=f32)
        t = (t + arc_bias_ref[...]).astype(bf16).reshape(bt, s_row, a_pad)
        s_arc = lax.dot_general(t, arc_h, bdims, preferred_element_type=f32)
        # masked_fill_(~mask.unsqueeze(1), -inf): kill padding *head* columns
        s_arc_ref[...] = jnp.where(mask_ref[...] > 0.0, s_arc, -jnp.inf)

    # --- rel biaffine (bias_x=True, bias_y=True, n_out=n_rels), current group ---
    # T[m, r*R1+q] = sum_p rel_d[m,p]*W[r,p,q] + W[r,R,q]  (core + bias_x row); the
    # q == R column is the bias_y column and rel_h's "ones" lane is baked into the
    # fused MLP bias, so ONE batched contraction yields core + both biases + corner.
    rel_d = h_scr[:, :s_row, off_rd:off_rd + r_pad].reshape(bt * s_row, r_pad)
    rel_h = h_scr[:, :, off_rh:off_rh + r1_pad]           # (Bt, S_col, R1_pad)
    T = jnp.dot(rel_d, w_rel_left_ref[...], preferred_element_type=f32)
    T = (T + rel_bias_ref[...]).astype(bf16)              # (Bt*S_row, rg*R1_pad)
    rel = lax.dot_general(T.reshape(bt, s_row * rg, r1_pad), rel_h, bdims,
                          preferred_element_type=f32)     # (Bt, S_row*rg, S_col)
    s_rel_ref[...] = rel.reshape(bt, s_row, rg, s_col).astype(s_rel_ref.dtype)


def init_params(key, vocab, hidden, n_mlp_arc, n_mlp_rel, n_rels):
    ks = jax.random.split(key, 11)
    sc = 0.1
    n = lambda k, shape: jax.random.normal(k, shape, jnp.float32) * sc
    return {
        # TODO(synk): the pretrained TransformerEmbedding (BERT) encoder has no clean
        # Pallas equivalent; stood in by a deterministic embedding-table lookup.
        "embedding": n(ks[0], (vocab, hidden)),
        # MLP weights stored pre-transposed as (H, out) == nn.Linear.weight.T
        "w_arc_d": n(ks[1], (hidden, n_mlp_arc)), "b_arc_d": n(ks[2], (n_mlp_arc,)),
        "w_arc_h": n(ks[3], (hidden, n_mlp_arc)), "b_arc_h": n(ks[4], (n_mlp_arc,)),
        "w_rel_d": n(ks[5], (hidden, n_mlp_rel)), "b_rel_d": n(ks[6], (n_mlp_rel,)),
        "w_rel_h": n(ks[7], (hidden, n_mlp_rel)), "b_rel_h": n(ks[8], (n_mlp_rel,)),
        # Biaffine weights in PyTorch layout: (n_out, n_in + bias_x, n_in + bias_y)
        "w_arc": n(ks[9], (1, n_mlp_arc + 1, n_mlp_arc)),
        "w_rel": n(ks[10], (n_rels, n_mlp_rel + 1, n_mlp_rel + 1)),
    }


@jax.jit
def biaffine_decoder_forward(x, mask, params):
    """x: (B, S, H) encoder output; mask: (B, S) bool -> (s_arc f32, s_rel bf16)."""
    B, S, H = x.shape
    A = params["w_arc"].shape[2]
    n_rels, r_p1, _ = params["w_rel"].shape
    R = r_p1 - 1
    bf16, f32 = jnp.bfloat16, jnp.float32

    A_pad = _round_up(A, 128)
    R_pad = _round_up(R, 128)
    R1_pad = _round_up(R + 1, 128)
    n_rels_pad = _round_up(n_rels, 8)
    W_total = 2 * A_pad + R_pad + R1_pad
    off_rd = 2 * A_pad
    off_rh = 2 * A_pad + R_pad

    # ---- weight preprocessing (plain-XLA glue, outside the kernel) ----
    # Fused MLP weight/bias: [arc_d | arc_h | rel_d | rel_h(+ones col)] padded to 128.
    w_mlp = jnp.zeros((H, W_total), f32)
    w_mlp = w_mlp.at[:, 0:A].set(params["w_arc_d"].astype(f32))
    w_mlp = w_mlp.at[:, A_pad:A_pad + A].set(params["w_arc_h"].astype(f32))
    w_mlp = w_mlp.at[:, off_rd:off_rd + R].set(params["w_rel_d"].astype(f32))
    w_mlp = w_mlp.at[:, off_rh:off_rh + R].set(params["w_rel_h"].astype(f32))
    w_mlp = w_mlp.astype(bf16)
    b_mlp = jnp.zeros((1, W_total), f32)
    b_mlp = b_mlp.at[0, 0:A].set(params["b_arc_d"].astype(f32))
    b_mlp = b_mlp.at[0, A_pad:A_pad + A].set(params["b_arc_h"].astype(f32))
    b_mlp = b_mlp.at[0, off_rd:off_rd + R].set(params["b_rel_d"].astype(f32))
    b_mlp = b_mlp.at[0, off_rh:off_rh + R].set(params["b_rel_h"].astype(f32))
    b_mlp = b_mlp.at[0, off_rh + R].set(1.0)   # rel_h bias_y "ones" column

    # Arc biaffine: core (A_pad, A_pad) + bias_x row (1, A_pad).
    w_arc = params["w_arc"].astype(f32)                          # (1, A+1, A)
    w_arc_core = jnp.zeros((A_pad, A_pad), f32).at[:A, :A].set(w_arc[0, :A, :]).astype(bf16)
    arc_bias = jnp.zeros((1, A_pad), f32).at[0, :A].set(w_arc[0, A, :])

    # Rel biaffine, "left" layout: W_left[p, r*R1_pad + q] = W_rel[r, p, q] for
    # p < R, q <= R (q == R is the bias_y column); bias row = W_rel[r, R, q]
    # (bias_x row, including the corner at q == R).
    w_rel = params["w_rel"].astype(f32)                          # (n_rels, R+1, R+1)
    w_rel_left = jnp.zeros((R_pad, n_rels_pad, R1_pad), f32)
    w_rel_left = w_rel_left.at[:R, :n_rels, :R + 1].set(
        jnp.transpose(w_rel[:, :R, :], (1, 0, 2)))
    w_rel_left = w_rel_left.reshape(R_pad, n_rels_pad * R1_pad).astype(bf16)
    rel_bias = jnp.zeros((1, n_rels_pad, R1_pad), f32)
    rel_bias = rel_bias.at[0, :n_rels, :R + 1].set(w_rel[:, R, :])
    rel_bias = rel_bias.reshape(1, n_rels_pad * R1_pad)

    # ---- pad sequence: dep rows to x8 (sublane), head cols to x128 (lane-dense) ----
    # TODO(synk): for very-short-sentence workloads, length-bucketing S_col below 128
    # (masked stores) may beat lane-dense padding; benchmark both.
    S_col = _round_up(S, 128)
    S_row = _round_up(S, 8)
    Bt, rg, vmem_limit = _pick_block(B, S_row, S_col, H, A_pad, R_pad, R1_pad,
                                     n_rels_pad, W_total)
    B_pad = _round_up(B, Bt)
    n_g = n_rels_pad // rg

    x_p = jnp.zeros((B_pad, S_col, H), bf16).at[:B, :S, :].set(x.astype(bf16))
    mask_p = jnp.zeros((B_pad, 1, S_col), f32).at[:B, 0, :S].set(mask.astype(f32))

    def rep(arr):   # replicated (constant-index) weight operand
        nd = arr.ndim
        return pl.BlockSpec(arr.shape, lambda b, g, _nd=nd: (0,) * _nd)

    in_specs = [
        pl.BlockSpec((Bt, S_col, H), lambda b, g: (b, 0, 0)),        # x
        pl.BlockSpec((Bt, 1, S_col), lambda b, g: (b, 0, 0)),        # mask
        rep(w_mlp), rep(b_mlp), rep(w_arc_core), rep(arc_bias),
        pl.BlockSpec((R_pad, rg * R1_pad), lambda b, g: (0, g)),     # rel "left" W, per group
        pl.BlockSpec((1, rg * R1_pad), lambda b, g: (0, g)),         # rel bias row, per group
    ]
    out_specs = (
        pl.BlockSpec((Bt, S_row, S_col), lambda b, g: (b, 0, 0)),
        pl.BlockSpec((Bt, S_row, rg, S_col), lambda b, g: (b, 0, g, 0)),
    )
    out_shape = (
        jax.ShapeDtypeStruct((B_pad, S_row, S_col), f32),
        jax.ShapeDtypeStruct((B_pad, S_row, n_rels_pad, S_col), bf16),
    )

    s_arc_p, s_rel_p = pl.pallas_call(
        _biaffine_kernel,
        grid=(B_pad // Bt, n_g),
        in_specs=in_specs,
        out_specs=out_specs,
        out_shape=out_shape,
        scratch_shapes=[pltpu.VMEM((Bt, S_col, W_total), bf16)],
        compiler_params=pltpu.CompilerParams(
            dimension_semantics=("parallel", "arbitrary"),
            vmem_limit_bytes=vmem_limit),
    )(x_p, mask_p, w_mlp, b_mlp, w_arc_core, arc_bias, w_rel_left, rel_bias)

    s_arc = s_arc_p[:B, :S, :S]
    # torch: s_rel = rel_attn(rel_d, rel_h).permute(0, 2, 3, 1) -> (B, S, S, n_rels).
    # Our slab is (B, S_dep, n_rels, S_head) -> permute (0, 1, 3, 2).
    # NOTE: s_rel is returned in bf16 (f32 accumulation inside the kernel).
    s_rel = jnp.transpose(s_rel_p[:B, :S, :n_rels, :S], (0, 1, 3, 2))
    return s_arc, s_rel


def biaffine_dependency_forward(words, params):
    # Encoder stand-in (glue): deterministic embedding lookup -> x [B, S, H]
    x = params["embedding"][words].astype(jnp.float32)
    mask = words != 0                      # mask = words.ne(0)
    return biaffine_decoder_forward(x, mask, params)


def _reference_forward(words, params):
    """Pure-JAX f32 reference of the PyTorch module (eval mode)."""
    x = params["embedding"][words].astype(jnp.float32)
    mask = words != 0

    def mlp(w, b):
        h = x @ w + b
        return jnp.where(h > 0, h, 0.1 * h)

    arc_d = mlp(params["w_arc_d"], params["b_arc_d"])
    arc_h = mlp(params["w_arc_h"], params["b_arc_h"])
    rel_d = mlp(params["w_rel_d"], params["b_rel_d"])
    rel_h = mlp(params["w_rel_h"], params["b_rel_h"])
    ones = jnp.ones(arc_d.shape[:-1] + (1,), jnp.float32)
    s_arc = jnp.einsum('bxi,oij,byj->boxy',
                       jnp.concatenate([arc_d, ones], -1), params["w_arc"], arc_h)[:, 0]
    s_arc = jnp.where(mask[:, None, :], s_arc, -jnp.inf)
    s_rel = jnp.einsum('bxi,oij,byj->boxy',
                       jnp.concatenate([rel_d, ones], -1), params["w_rel"],
                       jnp.concatenate([rel_h, ones], -1))
    return s_arc, jnp.transpose(s_rel, (0, 2, 3, 1))


if __name__ == "__main__":
    B, S, H = 2, 8, 32          # batch, seq_len, encoder hidden_size
    A, R, n_rels = 32, 16, 8    # n_mlp_arc, n_mlp_rel, n_rels
    vocab = 40

    key = jax.random.PRNGKey(0)
    k_params, k_words = jax.random.split(key)
    params = init_params(k_params, vocab, H, A, R, n_rels)

    words = jax.random.randint(k_words, (B, S), 1, vocab, dtype=jnp.int32)
    words = words.at[0, 6:].set(0)   # padding to exercise the mask path

    s_arc, s_rel = biaffine_dependency_forward(words, params)
    jax.block_until_ready((s_arc, s_rel))

    assert s_arc.shape == (B, S, S), s_arc.shape
    assert s_rel.shape == (B, S, S, n_rels), s_rel.shape
    assert bool(jnp.all(jnp.isneginf(s_arc[0, :, 6:])))     # masked head columns
    assert bool(jnp.all(jnp.isfinite(s_arc[1])))            # unmasked batch item

    # numeric cross-check vs plain-JAX f32 reference
    # (bf16 MXU inputs + bf16 s_rel output -> loose tolerance)
    ref_arc, ref_rel = _reference_forward(words, params)
    assert bool(jnp.array_equal(jnp.isneginf(s_arc), jnp.isneginf(ref_arc)))
    fin = jnp.isfinite(ref_arc)
    scale_a = float(jnp.max(jnp.abs(jnp.where(fin, ref_arc, 0.0)))) + 1e-6
    err_a = float(jnp.max(jnp.abs(jnp.where(fin, s_arc - ref_arc, 0.0))))
    scale_r = float(jnp.max(jnp.abs(ref_rel))) + 1e-6
    err_r = float(jnp.max(jnp.abs(s_rel.astype(jnp.float32) - ref_rel)))
    assert err_a <= 0.05 * scale_a + 1e-3, (err_a, scale_a)
    assert err_r <= 0.05 * scale_r + 1e-3, (err_r, scale_r)

    print("KERNEL_OK")
</pallas_src>

<mosaic_0001>
module attributes {stable_mosaic.version = 11 : i64} {
  func.func @_biaffine_kernel(%arg0: i32, %arg1: i32, %arg2: memref<1x128x32xbf16, #tpu.memory_space<vmem>>, %arg3: memref<1x1x128xf32, #tpu.memory_space<vmem>>, %arg4: memref<32x512xbf16, #tpu.memory_space<vmem>>, %arg5: memref<1x512xf32, #tpu.memory_space<vmem>>, %arg6: memref<128x128xbf16, #tpu.memory_space<vmem>>, %arg7: memref<1x128xf32, #tpu.memory_space<vmem>>, %arg8: memref<128x1024xbf16, #tpu.memory_space<vmem>>, %arg9: memref<1x1024xf32, #tpu.memory_space<vmem>>, %arg10: memref<1x8x128xf32, #tpu.memory_space<vmem>>, %arg11: memref<1x8x8x128xbf16, #tpu.memory_space<vmem>>, %arg12: memref<1x128x512xbf16, #tpu.memory_space<vmem>>) attributes {dimension_semantics = [#tpu.dimension_semantics<parallel>, #tpu.dimension_semantics<arbitrary>], iteration_bounds = array<i64: 2, 1>, scalar_prefetch = 0 : i64, scratch_operands = 1 : i64, tpu.core_type = #tpu.core_type<tc>, window_params = [{transform_indices = @transform_0, window_bounds = array<i64: 1, 128, 32>}, {transform_indices = @transform_1, window_bounds = array<i64: 1, 1, 128>}, {pipeline_mode = #tpu.pipeline_mode<synchronous>, transform_indices = @transform_2, window_bounds = array<i64: 32, 512>}, {pipeline_mode = #tpu.pipeline_mode<synchronous>, transform_indices = @transform_3, window_bounds = array<i64: 1, 512>}, {pipeline_mode = #tpu.pipeline_mode<synchronous>, transform_indices = @transform_4, window_bounds = array<i64: 128, 128>}, {pipeline_mode = #tpu.pipeline_mode<synchronous>, transform_indices = @transform_5, window_bounds = array<i64: 1, 128>}, {transform_indices = @transform_6, window_bounds = array<i64: 128, 1024>}, {transform_indices = @transform_7, window_bounds = array<i64: 1, 1024>}, {transform_indices = @transform_8, window_bounds = array<i64: 1, 8, 128>}, {transform_indices = @transform_9, window_bounds = array<i64: 1, 8, 8, 128>}]} {
    %c0_i32 = arith.constant 0 : i32
    %0 = arith.cmpi eq, %arg1, %c0_i32 : i32
    %1 = arith.extui %0 : i1 to i32
    %c0_i32_0 = arith.constant 0 : i32
    %2 = arith.cmpi ne, %1, %c0_i32_0 : i32
    scf.if %2 {
      %c0_13 = arith.constant 0 : index
      %c0_14 = arith.constant 0 : index
      %c0_15 = arith.constant 0 : index
      %17 = vector.load %arg2[%c0_13, %c0_14, %c0_15] : memref<1x128x32xbf16, #tpu.memory_space<vmem>>, vector<1x128x32xbf16>
      %18 = vector.shape_cast %17 : vector<1x128x32xbf16> to vector<128x32xbf16>
      %c0_16 = arith.constant 0 : index
      %c0_17 = arith.constant 0 : index
      %19 = vector.load %arg4[%c0_16, %c0_17] : memref<32x512xbf16, #tpu.memory_space<vmem>>, vector<32x512xbf16>
      %cst_18 = arith.constant dense<0.000000e+00> : vector<128x512xf32>
      %20 = tpu.matmul %18, %19, %cst_18 {dimension_numbers = #tpu.dot_dimension_numbers<[1], [0], [0], [1], [0, 0, 1, 1], [], []>} : vector<128x32xbf16>, vector<32x512xbf16>, vector<128x512xf32> -> vector<128x512xf32>
      %c0_19 = arith.constant 0 : index
      %c0_20 = arith.constant 0 : index
      %21 = vector.load %arg5[%c0_19, %c0_20] : memref<1x512xf32, #tpu.memory_space<vmem>>, vector<1x512xf32>
      %22 = vector.broadcast %21 : vector<1x512xf32> to vector<128x512xf32>
      %23 = arith.addf %20, %22 : vector<128x512xf32>
      %cst_21 = arith.constant 0.000000e+00 : f32
      %24 = vector.broadcast %cst_21 : f32 to vector<128x512xf32>
      %25 = arith.cmpf ogt, %23, %24 : vector<128x512xf32>
      %cst_22 = arith.constant 1.000000e-01 : f32
      %26 = vector.broadcast %cst_22 : f32 to vector<128x512xf32>
      %27 = arith.mulf %26, %23 : vector<128x512xf32>
      %28 = arith.select %25, %23, %27 : vector<128x512xi1>, vector<128x512xf32>
      %29 = arith.truncf %28 : vector<128x512xf32> to vector<128x512xbf16>
      %30 = vector.shape_cast %29 : vector<128x512xbf16> to vector<1x128x512xbf16>
      %c0_23 = arith.constant 0 : index
      %c0_24 = arith.constant 0 : index
      %c0_25 = arith.constant 0 : index
      %31 = vector.load %arg12[%c0_23, %c0_24, %c0_25] : memref<1x128x512xbf16, #tpu.memory_space<vmem>>, vector<1x128x512xbf16>
      tpu.vector_store %arg12[%c0_23, %c0_24, %c0_25], %30 {strides = array<i32>} : memref<1x128x512xbf16, #tpu.memory_space<vmem>>, vector<1x128x512xbf16>,
      %32 = vector.extract_strided_slice %30 {offsets = [0, 0, 0], sizes = [1, 8, 128], strides = [1, 1, 1]} : vector<1x128x512xbf16> to vector<1x8x128xbf16>
      %33 = vector.shape_cast %32 : vector<1x8x128xbf16> to vector<8x128xbf16>
      %34 = vector.extract_strided_slice %30 {offsets = [0, 0, 128], sizes = [1, 128, 128], strides = [1, 1, 1]} : vector<1x128x512xbf16> to vector<1x128x128xbf16>
      %c0_26 = arith.constant 0 : index
      %c0_27 = arith.constant 0 : index
      %35 = vector.load %arg6[%c0_26, %c0_27] : memref<128x128xbf16, #tpu.memory_space<vmem>>, vector<128x128xbf16>
      %cst_28 = arith.constant dense<0.000000e+00> : vector<8x128xf32>
      %36 = tpu.matmul %33, %35, %cst_28 {dimension_numbers = #tpu.dot_dimension_numbers<[1], [0], [0], [1], [0, 0, 1, 1], [], []>} : vector<8x128xbf16>, vector<128x128xbf16>, vector<8x128xf32> -> vector<8x128xf32>
      %c0_29 = arith.constant 0 : index
      %c0_30 = arith.constant 0 : index
      %37 = vector.load %arg7[%c0_29, %c0_30] : memref<1x128xf32, #tpu.memory_space<vmem>>, vector<1x128xf32>
      %38 = vector.broadcast %37 : vector<1x128xf32> to vector<8x128xf32>
      %39 = arith.addf %36, %38 : vector<8x128xf32>
      %40 = arith.truncf %39 : vector<8x128xf32> to vector<8x128xbf16>
      %41 = vector.shape_cast %40 : vector<8x128xbf16> to vector<1x8x128xbf16>
      %cst_31 = arith.constant dense<0.000000e+00> : vector<1x8x128xf32>
      %42 = tpu.matmul %41, %34, %cst_31 {dimension_numbers = #tpu.dot_dimension_numbers<[2], [2], [1], [1], [0, 0, 0, 1, 1, 1], [0], [0]>} : vector<1x8x128xbf16>, vector<1x128x128xbf16>, vector<1x8x128xf32> -> vector<1x8x128xf32>
      %c0_32 = arith.constant 0 : index
      %c0_33 = arith.constant 0 : index
      %c0_34 = arith.constant 0 : index
      %43 = vector.load %arg3[%c0_32, %c0_33, %c0_34] : memref<1x1x128xf32, #tpu.memory_space<vmem>>, vector<1x1x128xf32>
      %cst_35 = arith.constant 0.000000e+00 : f32
      %44 = vector.broadcast %cst_35 : f32 to vector<1x1x128xf32>
      %45 = arith.cmpf ogt, %43, %44 : vector<1x1x128xf32>
      %cst_36 = arith.constant 0xFF800000 : f32
      %46 = vector.shape_cast %45 : vector<1x1x128xi1> to vector<1x1x128xi1>
      %47 = vector.broadcast %46 : vector<1x1x128xi1> to vector<1x8x128xi1>
      %48 = vector.broadcast %cst_36 : f32 to vector<1x8x128xf32>
      %49 = arith.select %47, %42, %48 : vector<1x8x128xi1>, vector<1x8x128xf32>
      %c0_37 = arith.constant 0 : index
      %c0_38 = arith.constant 0 : index
      %c0_39 = arith.constant 0 : index
      %50 = vector.load %arg10[%c0_37, %c0_38, %c0_39] : memref<1x8x128xf32, #tpu.memory_space<vmem>>, vector<1x8x128xf32>
      tpu.vector_store %arg10[%c0_37, %c0_38, %c0_39], %49 {strides = array<i32>} : memref<1x8x128xf32, #tpu.memory_space<vmem>>, vector<1x8x128xf32>,
    } else {
    }
    %c0 = arith.constant 0 : index
    %c0_1 = arith.constant 0 : index
    %c256 = arith.constant 256 : index
    %3 = vector.load %arg12[%c0, %c0_1, %c256] : memref<1x128x512xbf16, #tpu.memory_space<vmem>>, vector<1x8x128xbf16>
    %4 = vector.shape_cast %3 : vector<1x8x128xbf16> to vector<8x128xbf16>
    %c0_2 = arith.constant 0 : index
    %c0_3 = arith.constant 0 : index
    %c384 = arith.constant 384 : index
    %5 = vector.load %arg12[%c0_2, %c0_3, %c384] : memref<1x128x512xbf16, #tpu.memory_space<vmem>>, vector<1x128x128xbf16>
    %c0_4 = arith.constant 0 : index
    %c0_5 = arith.constant 0 : index
    %6 = vector.load %arg8[%c0_4, %c0_5] : memref<128x1024xbf16, #tpu.memory_space<vmem>>, vector<128x1024xbf16>
    %cst = arith.constant dense<0.000000e+00> : vector<8x1024xf32>
    %7 = tpu.matmul %4, %6, %cst {dimension_numbers = #tpu.dot_dimension_numbers<[1], [0], [0], [1], [0, 0, 1, 1], [], []>} : vector<8x128xbf16>, vector<128x1024xbf16>, vector<8x1024xf32> -> vector<8x1024xf32>
    %c0_6 = arith.constant 0 : index
    %c0_7 = arith.constant 0 : index
    %8 = vector.load %arg9[%c0_6, %c0_7] : memref<1x1024xf32, #tpu.memory_space<vmem>>, vector<1x1024xf32>
    %9 = vector.broadcast %8 : vector<1x1024xf32> to vector<8x1024xf32>
    %10 = arith.addf %7, %9 : vector<8x1024xf32>
    %11 = arith.truncf %10 : vector<8x1024xf32> to vector<8x1024xbf16>
    %12 = vector.shape_cast %11 : vector<8x1024xbf16> to vector<1x64x128xbf16>
    %cst_8 = arith.constant dense<0.000000e+00> : vector<1x64x128xf32>
    %13 = tpu.matmul %12, %5, %cst_8 {dimension_numbers = #tpu.dot_dimension_numbers<[2], [2], [1], [1], [0, 0, 0, 1, 1, 1], [0], [0]>} : vector<1x64x128xbf16>, vector<1x128x128xbf16>, vector<1x64x128xf32> -> vector<1x64x128xf32>
    %14 = vector.shape_cast %13 : vector<1x64x128xf32> to vector<1x8x8x128xf32>
    %15 = arith.truncf %14 : vector<1x8x8x128xf32> to vector<1x8x8x128xbf16>
    %c0_9 = arith.constant 0 : index
    %c0_10 = arith.constant 0 : index
    %c0_11 = arith.constant 0 : index
    %c0_12 = arith.constant 0 : index
    %16 = vector.load %arg11[%c0_9, %c0_10, %c0_11, %c0_12] : memref<1x8x8x128xbf16, #tpu.memory_space<vmem>>, vector<1x8x8x128xbf16>
    tpu.vector_store %arg11[%c0_9, %c0_10, %c0_11, %c0_12], %15 {strides = array<i32>} : memref<1x8x8x128xbf16, #tpu.memory_space<vmem>>, vector<1x8x8x128xbf16>,
    return
  }
  func.func @transform_0(%arg0: i32, %arg1: i32) -> (i32, i32, i32) {
    %c0_i32 = arith.constant 0 : i32
    %c0_i32_0 = arith.constant 0 : i32
    %c0_i32_1 = arith.constant 0 : i32
    return %arg0, %c0_i32, %c0_i32_0 : i32, i32, i32
  }
  func.func @transform_1(%arg0: i32, %arg1: i32) -> (i32, i32, i32) {
    %c0_i32 = arith.constant 0 : i32
    %c0_i32_0 = arith.constant 0 : i32
    %c0_i32_1 = arith.constant 0 : i32
    return %arg0, %c0_i32, %c0_i32_0 : i32, i32, i32
  }
  func.func @transform_2(%arg0: i32, %arg1: i32) -> (i32, i32) {
    %c0_i32 = arith.constant 0 : i32
    %c0_i32_0 = arith.constant 0 : i32
    %c0_i32_1 = arith.constant 0 : i32
    return %c0_i32, %c0_i32_0 : i32, i32
  }
  func.func @transform_3(%arg0: i32, %arg1: i32) -> (i32, i32) {
    %c0_i32 = arith.constant 0 : i32
    %c0_i32_0 = arith.constant 0 : i32
    %c0_i32_1 = arith.constant 0 : i32
    return %c0_i32, %c0_i32_0 : i32, i32
  }
  func.func @transform_4(%arg0: i32, %arg1: i32) -> (i32, i32) {
    %c0_i32 = arith.constant 0 : i32
    %c0_i32_0 = arith.constant 0 : i32
    %c0_i32_1 = arith.constant 0 : i32
    return %c0_i32, %c0_i32_0 : i32, i32
  }
  func.func @transform_5(%arg0: i32, %arg1: i32) -> (i32, i32) {
    %c0_i32 = arith.constant 0 : i32
    %c0_i32_0 = arith.constant 0 : i32
    %c0_i32_1 = arith.constant 0 : i32
    return %c0_i32, %c0_i32_0 : i32, i32
  }
  func.func @transform_6(%arg0: i32, %arg1: i32) -> (i32, i32) {
    %c0_i32 = arith.constant 0 : i32
    %c0_i32_0 = arith.constant 0 : i32
    return %c0_i32, %arg1 : i32, i32
  }
  func.func @transform_7(%arg0: i32, %arg1: i32) -> (i32, i32) {
    %c0_i32 = arith.constant 0 : i32
    %c0_i32_0 = arith.constant 0 : i32
    return %c0_i32, %arg1 : i32, i32
  }
  func.func @transform_8(%arg0: i32, %arg1: i32) -> (i32, i32, i32) {
    %c0_i32 = arith.constant 0 : i32
    %c0_i32_0 = arith.constant 0 : i32
    %c0_i32_1 = arith.constant 0 : i32
    return %arg0, %c0_i32, %c0_i32_0 : i32, i32, i32
  }
  func.func @transform_9(%arg0: i32, %arg1: i32) -> (i32, i32, i32, i32) {
    %c0_i32 = arith.constant 0 : i32
    %c0_i32_0 = arith.constant 0 : i32
    %c0_i32_1 = arith.constant 0 : i32
    return %arg0, %c0_i32, %arg1, %c0_i32_0 : i32, i32, i32, i32
  }
}

</mosaic_0001>

<llo_original>
// kernel: biaffine_decoder_forward.1
$region0: #{biaffine_decoder_forward.1}
  #allocation0 [shape = 'u32[]', space=smem, size = 0x4, offset = 0x4, fixed_abs, tag = 'smem constant byte address 0x4 - core index']
  #allocation1 [shape = 'u32[144,128]{1,0:T(1,128)}', space=vmem, size = 0x12000, scoped, tag = 'internal scratch']
  #allocation2 [shape = 'bf16[1,128,512]{2,1,0:T(16,128)(2,1)}', space=vmem, size = 0x20000, scoped, tag = 'scratch operand']
  %s0 = inlined_call_operand.vmem [shape: bf16[2,128,32], index: 0, kind: input, shape index: {}]
  %s1 = inlined_call_operand.vmem [shape: f32[2,1,128], index: 1, kind: input, shape index: {}]
  %s2 = inlined_call_operand.vmem [shape: bf16[32,512], index: 2, kind: input, shape index: {}]
  %s3 = inlined_call_operand.vmem [shape: f32[1,512], index: 3, kind: input, shape index: {}]
  %s4 = inlined_call_operand.vmem [shape: bf16[128,128], index: 4, kind: input, shape index: {}]
  %s5 = inlined_call_operand.vmem [shape: f32[1,128], index: 5, kind: input, shape index: {}]
  %s6 = inlined_call_operand.vmem [shape: bf16[128,1024], index: 6, kind: input, shape index: {}]
  %s7 = inlined_call_operand.vmem [shape: f32[1,1024], index: 7, kind: input, shape index: {}]
  %s8 = inlined_call_operand.hbm [shape: f32[2,8,128], index: 8, kind: output, shape index: {0}]
  %s9 = inlined_call_operand.vmem [shape: bf16[2,8,8,128], index: 9, kind: output, shape index: {1}]
  %10 = xla_tuple %s8, %s9
  %s11 = sld [smem:[#allocation0]]
  $region77: #{biaffine_decoder_forward.1} parent=0
    _
  %s13 = ssub.s32 1, %s11
  %s14 = scalar_select 0, %s13, %s11
  $region1: #{biaffine_decoder_forward.1} parent=0
    #allocation3 [shape = 'u8[8192]{0}', space=vmem, size = 0x2000, scoped, tag = 'output window, operand 0']
    #allocation4 [shape = 's32[2]{0}', space=sflag, size = 0x8, scoped, tag = 'scoped memory for biaffine_decoder_forward.1']
    %15 = vsyncpa [#allocation4], 0
    %s16 = scalar_lea.sflag [#allocation4], 1
    %17 = vsyncpa %s16, 0
    loop: start=0, step=1, limit=4
    $region2: #{biaffine_decoder_forward.1} parent=1 // loop_pre_header
      _
    $region3: #{biaffine_decoder_forward.1} parent=1 // loop_header
      %s19 = sphi 0, %s23
      %p20 = scmp.ge.s32.totalorder %s19, 4
      %s26 = sphi 0, %s38
      %s27 = sphi 0, %s34
      %s28 = sphi 0, %s26
      %s29 = sphi 0, %s27
      %s30 = sphi 0, %s28
      %s31 = sphi 0, %s29
      %s41 = sphi 0, %s43
      %s44 = sphi 0, %s41
      %s45 = sphi 0, %s44
      %s61 = sphi 0, %s45
      %s67 = sphi 0, %s69
      %s70 = sphi 0, %s67
      %s71 = sphi 0, %s70
      %s87 = sphi 0, %s71
      %s91 = sphi 0, %s91
      %s93 = sphi 0, %s91
      %s94 = sphi 0, %s93
      %s108 = sphi 0, %s94
      %s112 = sphi 0, %s112
      %s114 = sphi 0, %s112
      %s115 = sphi 0, %s114
      %s129 = sphi 0, %s115
      %s133 = sphi 0, %s133
      %s135 = sphi 0, %s133
      %s136 = sphi 0, %s135
      %s150 = sphi 0, %s136
      %s154 = sphi 0, %s154
      %s156 = sphi 0, %s154
      %s157 = sphi 0, %s156
      %s171 = sphi 0, %s157
      %s177 = sphi 0, %s179
      %s180 = sphi 0, %s177
      %s181 = sphi 0, %s180
      %s197 = sphi 0, %s181
      %s203 = sphi 0, %s205
      %s206 = sphi 0, %s203
      %s207 = sphi 0, %s206
      %s223 = sphi 0, %s207
      %s229 = sphi 0, %s231
      %s232 = sphi 0, %s229
      %s233 = sphi 0, %s232
      %s249 = sphi 0, %s233
      %s257 = sphi 0, %s259
      %s260 = sphi 0, %s257
      %s261 = sphi 0, %s260
      %s277 = sphi 0, %s261
    $region4: #{biaffine_decoder_forward.1} parent=1 // loop_header_branch
      %22 = sbr.rel (%p20) target = $region8
    $region5: #{biaffine_decoder_forward.1} parent=1 // loop_body
      %s24 = ssub.s32 %s19, 1
      %s25 = ssub.s32 %s19, 2
      %s32 = sadd.s32 1, %s27
      %p33 = scmp.ge.s32.totalorder %s32, 1
      %s34 = scalar_select %p33, 0, %s32
      %s35 = sadd.s32 1, %s26
      %s36 = scalar_select %p33, %s35, %s26
      %p37 = scmp.ge.s32.totalorder %s36, 2
      %s38 = scalar_select %p37, 0, %s36
      %s39 = ssub.s32 %s26, %s38
      %p40 = scmp.eq.s32.totalorder %s39, 0
      %s42 = sadd.s32 %s41, 1
      %s43 = scalar_select %p40, %s41, %s42
      %p46 = pneg %p40
      %p47 = scmp.eq.s32.totalorder %s19, 1
      %p48 = por %p46, %p47
      %p49 = scmp.ne.s32.totalorder %s41, %s44
      %p50 = scmp.eq.s32.totalorder %s19, 0
      %p51 = por %p49, %p50
      %p52 = scmp.ne.s32.totalorder %s41, %s44
      %p53 = scmp.eq.s32.totalorder %s24, 1
      %p54 = por %p52, %p53
      %p55 = scmp.ne.s32.totalorder %s44, %s45
      %p56 = scmp.eq.s32.totalorder %s24, 0
      %p57 = por %p55, %p56
      %p58 = scmp.ne.s32.totalorder %s44, %s45
      %p59 = scmp.eq.s32.totalorder %s25, 1
      %p60 = por %p58, %p59
      %p62 = scmp.ne.s32.totalorder %s45, %s61
      %p63 = scmp.eq.s32.totalorder %s25, 0
      %p64 = por %p62, %p63
      %s65 = ssub.s32 %s26, %s38
      %p66 = scmp.eq.s32.totalorder %s65, 0
      %s68 = sadd.s32 %s67, 1
      %s69 = scalar_select %p66, %s67, %s68
      %p72 = pneg %p66
      %p73 = scmp.eq.s32.totalorder %s19, 1
      %p74 = por %p72, %p73
      %p75 = scmp.ne.s32.totalorder %s67, %s70
      %p76 = scmp.eq.s32.totalorder %s19, 0
      %p77 = por %p75, %p76
      %p78 = scmp.ne.s32.totalorder %s67, %s70
      %p79 = scmp.eq.s32.totalorder %s24, 1
      %p80 = por %p78, %p79
      %p81 = scmp.ne.s32.totalorder %s70, %s71
      %p82 = scmp.eq.s32.totalorder %s24, 0
      %p83 = por %p81, %p82
      %p84 = scmp.ne.s32.totalorder %s70, %s71
      %p85 = scmp.eq.s32.totalorder %s25, 1
      %p86 = por %p84, %p85
      %p88 = scmp.ne.s32.totalorder %s71, %s87
      %p89 = scmp.eq.s32.totalorder %s25, 0
      %p90 = por %p88, %p89
      %s92 = sadd.s32 %s91, 1
      %p95 = scmp.eq.s32.totalorder %s19, 1
      %p96 = scmp.ne.s32.totalorder %s91, %s93
      %p97 = scmp.eq.s32.totalorder %s19, 0
      %p98 = por %p96, %p97
      %p99 = scmp.ne.s32.totalorder %s91, %s93
      %p100 = scmp.eq.s32.totalorder %s24, 1
      %p101 = por %p99, %p100
      %p102 = scmp.ne.s32.totalorder %s93, %s94
      %p103 = scmp.eq.s32.totalorder %s24, 0
      %p104 = por %p102, %p103
      %p105 = scmp.ne.s32.totalorder %s93, %s94
      %p106 = scmp.eq.s32.totalorder %s25, 1
      %p107 = por %p105, %p106
      %p109 = scmp.ne.s32.totalorder %s94, %s108
      %p110 = scmp.eq.s32.totalorder %s25, 0
      %p111 = por %p109, %p110
      %s113 = sadd.s32 %s112, 1
      %p116 = scmp.eq.s32.totalorder %s19, 1
      %p117 = scmp.ne.s32.totalorder %s112, %s114
      %p118 = scmp.eq.s32.totalorder %s19, 0
      %p119 = por %p117, %p118
      %p120 = scmp.ne.s32.totalorder %s112, %s114
      %p121 = scmp.eq.s32.totalorder %s24, 1
      %p122 = por %p120, %p121
      %p123 = scmp.ne.s32.totalorder %s114, %s115
      %p124 = scmp.eq.s32.totalorder %s24, 0
      %p125 = por %p123, %p124
      %p126 = scmp.ne.s32.totalorder %s114, %s115
      %p127 = scmp.eq.s32.totalorder %s25, 1
      %p128 = por %p126, %p127
      %p130 = scmp.ne.s32.totalorder %s115, %s129
      %p131 = scmp.eq.s32.totalorder %s25, 0
      %p132 = por %p130, %p131
      %s134 = sadd.s32 %s133, 1
      %p137 = scmp.eq.s32.totalorder %s19, 1
      %p138 = scmp.ne.s32.totalorder %s133, %s135
      %p139 = scmp.eq.s32.totalorder %s19, 0
      %p140 = por %p138, %p139
      %p141 = scmp.ne.s32.totalorder %s133, %s135
      %p142 = scmp.eq.s32.totalorder %s24, 1
      %p143 = por %p141, %p142
      %p144 = scmp.ne.s32.totalorder %s135, %s136
      %p145 = scmp.eq.s32.totalorder %s24, 0
      %p146 = por %p144, %p145
      %p147 = scmp.ne.s32.totalorder %s135, %s136
      %p148 = scmp.eq.s32.totalorder %s25, 1
      %p149 = por %p147, %p148
      %p151 = scmp.ne.s32.totalorder %s136, %s150
      %p152 = scmp.eq.s32.totalorder %s25, 0
      %p153 = por %p151, %p152
      %s155 = sadd.s32 %s154, 1
      %p158 = scmp.eq.s32.totalorder %s19, 1
      %p159 = scmp.ne.s32.totalorder %s154, %s156
      %p160 = scmp.eq.s32.totalorder %s19, 0
      %p161 = por %p159, %p160
      %p162 = scmp.ne.s32.totalorder %s154, %s156
      %p163 = scmp.eq.s32.totalorder %s24, 1
      %p164 = por %p162, %p163
      %p165 = scmp.ne.s32.totalorder %s156, %s157
      %p166 = scmp.eq.s32.totalorder %s24, 0
      %p167 = por %p165, %p166
      %p168 = scmp.ne.s32.totalorder %s156, %s157
      %p169 = scmp.eq.s32.totalorder %s25, 1
      %p170 = por %p168, %p169
      %p172 = scmp.ne.s32.totalorder %s157, %s171
      %p173 = scmp.eq.s32.totalorder %s25, 0
      %p174 = por %p172, %p173
      %s175 = ssub.s32 %s27, %s34
      %p176 = scmp.eq.s32.totalorder %s175, 0
      %s178 = sadd.s32 %s177, 1
      %s179 = scalar_select %p176, %s177, %s178
      %p182 = pneg %p176
      %p183 = scmp.eq.s32.totalorder %s19, 1
      %p184 = por %p182, %p183
      %p185 = scmp.ne.s32.totalorder %s177, %s180
      %p186 = scmp.eq.s32.totalorder %s19, 0
      %p187 = por %p185, %p186
      %p188 = scmp.ne.s32.totalorder %s177, %s180
      %p189 = scmp.eq.s32.totalorder %s24, 1
      %p190 = por %p188, %p189
      %p191 = scmp.ne.s32.totalorder %s180, %s181
      %p192 = scmp.eq.s32.totalorder %s24, 0
      %p193 = por %p191, %p192
      %p194 = scmp.ne.s32.totalorder %s180, %s181
      %p195 = scmp.eq.s32.totalorder %s25, 1
      %p196 = por %p194, %p195
      %p198 = scmp.ne.s32.totalorder %s181, %s197
      %p199 = scmp.eq.s32.totalorder %s25, 0
      %p200 = por %p198, %p199
      %s201 = ssub.s32 %s27, %s34
      %p202 = scmp.eq.s32.totalorder %s201, 0
      %s204 = sadd.s32 %s203, 1
      %s205 = scalar_select %p202, %s203, %s204
      %p208 = pneg %p202
      %p209 = scmp.eq.s32.totalorder %s19, 1
      %p210 = por %p208, %p209
      %p211 = scmp.ne.s32.totalorder %s203, %s206
      %p212 = scmp.eq.s32.totalorder %s19, 0
      %p213 = por %p211, %p212
      %p214 = scmp.ne.s32.totalorder %s203, %s206
      %p215 = scmp.eq.s32.totalorder %s24, 1
      %p216 = por %p214, %p215
      %p217 = scmp.ne.s32.totalorder %s206, %s207
      %p218 = scmp.eq.s32.totalorder %s24, 0
      %p219 = por %p217, %p218
      %p220 = scmp.ne.s32.totalorder %s206, %s207
      %p221 = scmp.eq.s32.totalorder %s25, 1
      %p222 = por %p220, %p221
      %p224 = scmp.ne.s32.totalorder %s207, %s223
      %p225 = scmp.eq.s32.totalorder %s25, 0
      %p226 = por %p224, %p225
      %s227 = ssub.s32 %s26, %s38
      %p228 = scmp.eq.s32.totalorder %s227, 0
      %s230 = sadd.s32 %s229, 1
      %s231 = scalar_select %p228, %s229, %s230
      %p234 = pneg %p228
      %p235 = scmp.eq.s32.totalorder %s19, 1
      %p236 = por %p234, %p235
      %p237 = scmp.ne.s32.totalorder %s229, %s232
      %p238 = scmp.eq.s32.totalorder %s19, 0
      %p239 = por %p237, %p238
      %p240 = scmp.ne.s32.totalorder %s229, %s232
      %p241 = scmp.eq.s32.totalorder %s24, 1
      %p242 = por %p240, %p241
      %p243 = scmp.ne.s32.totalorder %s232, %s233
      %p244 = scmp.eq.s32.totalorder %s24, 0
      %p245 = por %p243, %p244
      %p246 = scmp.ne.s32.totalorder %s232, %s233
      %p247 = scmp.eq.s32.totalorder %s25, 1
      %p248 = por %p246, %p247
      %p250 = scmp.ne.s32.totalorder %s233, %s249
      %p251 = scmp.eq.s32.totalorder %s25, 0
      %p252 = por %p250, %p251
      %s253 = ssub.s32 %s26, %s38
      %s254 = ssub.s32 %s27, %s34
      %s255 = sor.u32 %s253, %s254
      %p256 = scmp.eq.s32.totalorder %s255, 0
      %s258 = sadd.s32 %s257, 1
      %s259 = scalar_select %p256, %s257, %s258
      %p262 = pneg %p256
      %p263 = scmp.eq.s32.totalorder %s19, 1
      %p264 = por %p262, %p263
      %p265 = scmp.ne.s32.totalorder %s257, %s260
      %p266 = scmp.eq.s32.totalorder %s19, 0
      %p267 = por %p265, %p266
      %p268 = scmp.ne.s32.totalorder %s257, %s260
      %p269 = scmp.eq.s32.totalorder %s24, 1
      %p270 = por %p268, %p269
      %p271 = scmp.ne.s32.totalorder %s260, %s261
      %p272 = scmp.eq.s32.totalorder %s24, 0
      %p273 = por %p271, %p272
      %p274 = scmp.ne.s32.totalorder %s260, %s261
      %p275 = scmp.eq.s32.totalorder %s25, 1
      %p276 = por %p274, %p275
      %p278 = scmp.ne.s32.totalorder %s261, %s277
      %p279 = scmp.eq.s32.totalorder %s25, 0
      %p280 = por %p278, %p279
      %p281 = scmp.le.s32.totalorder 1, %s19
      %p282 = scmp.lt.s32.totalorder %s19, 3
      %p283 = pnand %p281, %p282
      %p284 = pneg %p283
      // Predicated region
      $region9: #{biaffine_decoder_forward.1} parent=5 // pred_check
        _
      $region10: #{biaffine_decoder_forward.1} parent=5 // pred_check_branch
        %286 = sbr.rel (%p283) target = $region12
      $region11: #{biaffine_decoder_forward.1} parent=5 // pred_region
        %s287 = ssub.s32 %s19, 1
        // Predicated region
        $region13: #{biaffine_decoder_forward.1} parent=11 // pred_check
          %p288 = pneg %p104
        $region14: #{biaffine_decoder_forward.1} parent=11 // pred_check_branch
          %290 = sbr.rel (%p288) target = $region16
        $region15: #{biaffine_decoder_forward.1} parent=11 // pred_region
          _
        $region16: #{biaffine_decoder_forward.1} parent=11 // pred_fallthru
          _
        // Predicated region
        $region17: #{biaffine_decoder_forward.1} parent=11 // pred_check
          %p291 = pneg %p125
        $region18: #{biaffine_decoder_forward.1} parent=11 // pred_check_branch
          %293 = sbr.rel (%p291) target = $region20
        $region19: #{biaffine_decoder_forward.1} parent=11 // pred_region
          _
        $region20: #{biaffine_decoder_forward.1} parent=11 // pred_fallthru
          _
        // Predicated region
        $region21: #{biaffine_decoder_forward.1} parent=11 // pred_check
          %p294 = pneg %p146
        $region22: #{biaffine_decoder_forward.1} parent=11 // pred_check_branch
          %296 = sbr.rel (%p294) target = $region24
        $region23: #{biaffine_decoder_forward.1} parent=11 // pred_region
          _
        $region24: #{biaffine_decoder_forward.1} parent=11 // pred_fallthru
          _
        // Predicated region
        $region25: #{biaffine_decoder_forward.1} parent=11 // pred_check
          %p297 = pneg %p167
        $region26: #{biaffine_decoder_forward.1} parent=11 // pred_check_branch
          %299 = sbr.rel (%p297) target = $region28
        $region27: #{biaffine_decoder_forward.1} parent=11 // pred_region
          _
        $region28: #{biaffine_decoder_forward.1} parent=11 // pred_fallthru
          _
        // Predicated region
        $region29: #{biaffine_decoder_forward.1} parent=11 // pred_check
          %p300 = pneg %p193
        $region30: #{biaffine_decoder_forward.1} parent=11 // pred_check_branch
          %302 = sbr.rel (%p300) target = $region32
        $region31: #{biaffine_decoder_forward.1} parent=11 // pred_region
          %s303 = smul.u32 8, %s29
          %p304 = scmp.lt.s32.totalorder %s303, 7
          %s305 = scalar_select %p304, %s303, 7
          %s306 = smul.addr %s305, 4
          %s307 = scalar_lea.vmem %s6, %s306
          %s308 = smul.u32 8, %s29
        $region32: #{biaffine_decoder_forward.1} parent=11 // pred_fallthru
          _
        // Predicated region
        $region33: #{biaffine_decoder_forward.1} parent=11 // pred_check
          %p309 = pneg %p219
        $region34: #{biaffine_decoder_forward.1} parent=11 // pred_check_branch
          %311 = sbr.rel (%p309) target = $region36
        $region35: #{biaffine_decoder_forward.1} parent=11 // pred_region
          %s312 = smul.u32 8, %s29
          %p313 = scmp.lt.s32.totalorder %s312, 7
          %s314 = scalar_select %p313, %s312, 7
          %s315 = scalar_lea.vmem %s7, %s314
          %s316 = smul.u32 8, %s29
        $region36: #{biaffine_decoder_forward.1} parent=11 // pred_fallthru
          _
      $region12: #{biaffine_decoder_forward.1} parent=5 // pred_fallthru
        _
      %p317 = scmp.lt.s32.totalorder %s19, 2
      // Predicated region
      $region37: #{biaffine_decoder_forward.1} parent=5 // pred_check
        %p318 = pneg %p317
      $region38: #{biaffine_decoder_forward.1} parent=5 // pred_check_branch
        %320 = sbr.rel (%p318) target = $region40
      $region39: #{biaffine_decoder_forward.1} parent=5 // pred_region
        // Predicated region
        $region41: #{biaffine_decoder_forward.1} parent=39 // pred_check
          %p321 = pneg %p51
        $region42: #{biaffine_decoder_forward.1} parent=39 // pred_check_branch
          %323 = sbr.rel (%p321) target = $region44
        $region43: #{biaffine_decoder_forward.1} parent=39 // pred_region
          %p324 = scmp.lt.s32.totalorder %s26, 1
          %s325 = scalar_select %p324, %s26, 1
          %s326 = smul.addr %s325, 16
          %s327 = smul.addr %s326, 4
          %s328 = scalar_lea.vmem %s0, %s327
        $region44: #{biaffine_decoder_forward.1} parent=39 // pred_fallthru
          _
        // Predicated region
        $region45: #{biaffine_decoder_forward.1} parent=39 // pred_check
          %p329 = pneg %p77
        $region46: #{biaffine_decoder_forward.1} parent=39 // pred_check_branch
          %331 = sbr.rel (%p329) target = $region48
        $region47: #{biaffine_decoder_forward.1} parent=39 // pred_region
          %p332 = scmp.lt.s32.totalorder %s26, 1
          %s333 = scalar_select %p332, %s26, 1
          %s334 = scalar_lea.vmem %s1, %s333
        $region48: #{biaffine_decoder_forward.1} parent=39 // pred_fallthru
          _
      $region40: #{biaffine_decoder_forward.1} parent=5 // pred_fallthru
        _
      %p335 = scmp.le.s32.totalorder 1, %s19
      %p336 = scmp.lt.s32.totalorder %s19, 3
      %p337 = pnand %p335, %p336
      %p338 = pneg %p337
      // Predicated region
      $region49: #{biaffine_decoder_forward.1} parent=5 // pred_check
        _
      $region50: #{biaffine_decoder_forward.1} parent=5 // pred_check_branch
        %340 = sbr.rel (%p337) target = $region52
      $region51: #{biaffine_decoder_forward.1} parent=5 // pred_region
        %s341 = ssub.s32 %s19, 1
        %p342 = scmp.lt.s32.totalorder %s28, 1
        %s343 = scalar_select %p342, %s28, 1
        %s344 = smul.addr %s343, 16
        %s345 = smul.addr %s344, 4
        %s346 = scalar_lea.vmem %s0, %s345
        %p347 = pneg %p57
        %p348 = pneg %p54
        %p349 = scmp.lt.s32.totalorder %s28, 1
        %s350 = scalar_select %p349, %s28, 1
        %s351 = scalar_lea.vmem %s1, %s350
        %p352 = pneg %p83
        %p353 = pneg %p80
        %p354 = pneg %p104
        %p355 = pneg %p101
        %p356 = pneg %p125
        %p357 = pneg %p122
        %p358 = pneg %p146
        %p359 = pneg %p143
        %p360 = pneg %p167
        %p361 = pneg %p164
        %s362 = smul.u32 8, %s29
        %p363 = scmp.lt.s32.totalorder %s362, 7
        %s364 = scalar_select %p363, %s362, 7
        %s365 = smul.addr %s364, 4
        %s366 = scalar_lea.vmem %s6, %s365
        %p367 = pneg %p193
        %p368 = pneg %p190
        %s369 = smul.u32 8, %s29
        %p370 = scmp.lt.s32.totalorder %s369, 7
        %s371 = scalar_select %p370, %s369, 7
        %s372 = scalar_lea.vmem %s7, %s371
        %p373 = pneg %p219
        %p374 = pneg %p216
        %p375 = pneg %p245
        %p376 = pneg %p242
        %s377 = sand.u32 %s232, 1
        %s378 = scalar_lea.sflag [#allocation4], %s377
        %s379 = sand.u32 %s232, 1
        %s380 = smul.addr %s379, 8
        %s381 = scalar_lea.vmem [#allocation3], %s380
        %p382 = pneg %p273
        %p383 = pneg %p270
        %p384 = scmp.lt.s32.totalorder %s28, 1
        %s385 = scalar_select %p384, %s28, 1
        %p386 = scmp.lt.s32.totalorder %s29, 0
        %s387 = scalar_select %p386, %s29, 0
        %s388 = smul.addr %s385, 8
        %s389 = sadd.s32 %s387, %s388
        %s390 = smul.addr %s389, 4
        %s391 = scalar_lea.vmem %s9, %s390
        %p392 = scmp.lt.s32.totalorder %s28, 1
        %s393 = scalar_select %p392, %s28, 1
        %s394 = smul.addr %s393, 16
        %s395 = smul.addr %s394, 4
        %s396 = scalar_lea.vmem %s0, %s395
        %p397 = scmp.lt.s32.totalorder %s28, 1
        %s398 = scalar_select %p397, %s28, 1
        %s399 = scalar_lea.vmem %s1, %s398
        %s400 = smul.u32 8, %s29
        %p401 = scmp.lt.s32.totalorder %s400, 7
        %s402 = scalar_select %p401, %s400, 7
        %s403 = smul.addr %s402, 4
        %s404 = scalar_lea.vmem %s6, %s403
        %s405 = smul.u32 8, %s29
        %s406 = smul.u32 8, %s29
        %p407 = scmp.lt.s32.totalorder %s406, 7
        %s408 = scalar_select %p407, %s406, 7
        %s409 = scalar_lea.vmem %s7, %s408
        %s410 = smul.u32 8, %s29
        %p411 = scmp.lt.s32.totalorder %s28, 1
        %s412 = scalar_select %p411, %s28, 1
        %p413 = scmp.lt.s32.totalorder %s29, 0
        %s414 = scalar_select %p413, %s29, 0
        %s415 = smul.addr %s412, 8
        %s416 = sadd.s32 %s414, %s415
        %s417 = smul.addr %s416, 4
        %s418 = scalar_lea.vmem %s9, %s417
        %p420 = scmp.eq.s32.totalorder %s29, 0
        // Predicated region
        $region53: #{biaffine_decoder_forward.1} parent=51 // pred_check
          %p421 = pneg %p420
        $region54: #{biaffine_decoder_forward.1} parent=51 // pred_check_branch
          %423 = sbr.rel (%p421) target = $region56
        $region55: #{biaffine_decoder_forward.1} parent=51 // pred_region
          %v424 = vld [vmem:[%s396] sm:$0xf]
          %v425 = vld [vmem:[%s396 + $0x4] sm:$0xf]
          %v426 = vld [vmem:[%s396 + $0x8] sm:$0xf]
          %v427 = vld [vmem:[%s396 + $0xc] sm:$0xf]
          %v428 = vld [vmem:[%s396 + $0x10] sm:$0xf]
          %v429 = vld [vmem:[%s396 + $0x14] sm:$0xf]
          %v430 = vld [vmem:[%s396 + $0x18] sm:$0xf]
          %v431 = vld [vmem:[%s396 + $0x1c] sm:$0xf]
          %v432 = vld [vmem:[%s396 + $0x20] sm:$0xf]
          %v433 = vld [vmem:[%s396 + $0x24] sm:$0xf]
          %v434 = vld [vmem:[%s396 + $0x28] sm:$0xf]
          %v435 = vld [vmem:[%s396 + $0x2c] sm:$0xf]
          %v436 = vld [vmem:[%s396 + $0x30] sm:$0xf]
          %v437 = vld [vmem:[%s396 + $0x34] sm:$0xf]
          %v438 = vld [vmem:[%s396 + $0x38] sm:$0xf]
          %v439 = vld [vmem:[%s396 + $0x3c] sm:$0xf]
          %v440 = vld [vmem:[%s2] sm:$0xff]
          %v441 = vld [vmem:[%s2 + $0x8] sm:$0xff]
          %v442 = vld [vmem:[%s2 + $0x10] sm:$0xff]
          %v443 = vld [vmem:[%s2 + $0x18] sm:$0xff]
          %v444 = vld [vmem:[%s2 + $0x20] sm:$0xff]
          %v445 = vld [vmem:[%s2 + $0x28] sm:$0xff]
          %v446 = vld [vmem:[%s2 + $0x30] sm:$0xff]
          %v447 = vld [vmem:[%s2 + $0x38] sm:$0xff]
          %v448 = vld [vmem:[%s3] sm:$0xf]
          %v450 = vlaneseq
          %v451 = vshrl.u32 %v450, 7
          %v452 = vsub.s32 0, %v451
          %v453 = vrot.slane %v448, %v452
          %v454 = vlaneseq
          %v455 = vshrl.u32 %v454, 7
          %v456 = vsub.s32 1, %v455
          %v457 = vrot.slane %v448, %v456
          %v458 = vlaneseq
          %v459 = vshrl.u32 %v458, 7
          %v460 = vsub.s32 2, %v459
          %v461 = vrot.slane %v448, %v460
          %v462 = vlaneseq
          %v463 = vshrl.u32 %v462, 7
          %v464 = vsub.s32 3, %v463
          %v465 = vrot.slane %v448, %v464
          %v486 = vunpack.c.l.b16 %v424
          %v487 = vunpack.c.l.b16 %v425
          %v488 = vunpack.c.l.b16 %v426
          %v489 = vunpack.c.l.b16 %v427
          %v490 = vunpack.c.l.b16 %v428
          %v491 = vunpack.c.l.b16 %v429
          %v492 = vunpack.c.l.b16 %v430
          %v493 = vunpack.c.l.b16 %v431
          %v494 = vunpack.c.l.b16 %v432
          %v495 = vunpack.c.l.b16 %v433
          %v496 = vunpack.c.l.b16 %v434
          %v497 = vunpack.c.l.b16 %v435
          %v498 = vunpack.c.l.b16 %v436
          %v499 = vunpack.c.l.b16 %v437
          %v500 = vunpack.c.l.b16 %v438
          %v501 = vunpack.c.l.b16 %v439
          %v502 = vpack.c.b16 %v487, %v486
          %v503 = vpack.c.b16 %v489, %v488
          %v504 = vpack.c.b16 %v491, %v490
          %v505 = vpack.c.b16 %v493, %v492
          %v506 = vpack.c.b16 %v495, %v494
          %v507 = vpack.c.b16 %v497, %v496
          %v508 = vpack.c.b16 %v499, %v498
          %v509 = vpack.c.b16 %v501, %v500
          %v518 = vunpack.c.l.b16 %v440
          %v519 = vunpack.c.h.b16 %v440
          %v520 = vunpack.c.l.b16 %v441
          %v521 = vunpack.c.h.b16 %v441
          %v522 = vunpack.c.l.b16 %v442
          %v523 = vunpack.c.h.b16 %v442
          %v524 = vunpack.c.l.b16 %v443
          %v525 = vunpack.c.h.b16 %v443
          %v526 = vunpack.c.l.b16 %v444
          %v527 = vunpack.c.h.b16 %v444
          %v528 = vunpack.c.l.b16 %v445
          %v529 = vunpack.c.h.b16 %v445
          %v530 = vunpack.c.l.b16 %v446
          %v531 = vunpack.c.h.b16 %v446
          %v532 = vunpack.c.l.b16 %v447
          %v533 = vunpack.c.h.b16 %v447
          %v534 = vpack.c.b16 %v522, %v518
          %v535 = vpack.c.b16 %v523, %v519
          %v536 = vpack.c.b16 %v524, %v520
          %v537 = vpack.c.b16 %v525, %v521
          %v538 = vpack.c.b16 %v530, %v526
          %v539 = vpack.c.b16 %v531, %v527
          %v540 = vpack.c.b16 %v532, %v528
          %v541 = vpack.c.b16 %v533, %v529
          %vm550 = vcmask 261120
          %v552 = vsel %vm550, %v502, 0
          %v555 = vsel %vm550, %v503, 0
          %v558 = vsel %vm550, %v504, 0
          %v561 = vsel %vm550, %v505, 0
          %v564 = vsel %vm550, %v506, 0
          %v567 = vsel %vm550, %v507, 0
          %v570 = vsel %vm550, %v508, 0
          %v573 = vsel %vm550, %v509, 0
          %575 = vmatprep.subr.bf16.mxu0 %v535
          %576 = vmatpush1.bf16.msra.mxu0 %v534
          %577 = vmatprep.subr.bf16.mxu0 %v539
          %578 = vmatpush1.bf16.msra.mxu0 %v538
          %579 = vmatprep.subr.bf16.mxu0 0
          %580 = vmatpush1.bf16.msra.mxu0 0
          %581 = vmatprep.subr.bf16.mxu0 0
          %582 = vmatpush1.bf16.msra.mxu0 0
          %583 = vmatprep.subr.bf16.mxu0 0
          %584 = vmatpush1.bf16.msra.mxu0 0
          %585 = vmatprep.subr.bf16.mxu0 0
          %586 = vmatpush1.bf16.msra.mxu0 0
          %587 = vmatprep.subr.bf16.mxu0 0
          %588 = vmatpush1.bf16.msra.mxu0 0
          %589 = vmatprep.subr.bf16.mxu0 0
          %590 = vmatpush1.bf16.msra.mxu0 0
          %591 = vmatprep.subr.bf16.mxu0 0
          %592 = vmatpush1.bf16.msra.mxu0 0
          %593 = vmatprep.subr.bf16.mxu0 0
          %594 = vmatpush1.bf16.msra.mxu0 0
          %595 = vmatprep.subr.bf16.mxu0 0
          %596 = vmatpush1.bf16.msra.mxu0 0
          %597 = vmatprep.subr.bf16.mxu0 0
          %598 = vmatpush1.bf16.msra.mxu0 0
          %599 = vmatprep.subr.bf16.mxu0 0
          %600 = vmatpush1.bf16.msra.mxu0 0
          %601 = vmatprep.subr.bf16.mxu0 0
          %602 = vmatpush1.bf16.msra.mxu0 0
          %603 = vmatprep.subr.bf16.mxu0 0
          %604 = vmatpush1.bf16.msra.mxu0 0
          %605 = vmatprep.subr.bf16.mxu0 0
          %606 = vmatpush1.bf16.msra.mxu0 0
          %607 = vmatprep.mubr.bf16.mxu0 0
          %608 = vmatmul.mubr.bf16.gmra.mrb[0].mxu0 %v552
          %v609 = vpop.f32.mrb[0].mxu0
          %v610 = vadd.f32 %v453, %v609
          %v611 = vpop.f32.mrb[0].mxu0
          %v612 = vadd.f32 %v457, %v611
          %v613 = vpop.f32.mrb[0].mxu0
          %v614 = vadd.f32 %v453, %v613
          %v615 = vpop.f32.mrb[0].mxu0
          %v616 = vadd.f32 %v457, %v615
          %617 = vmatprep.mubr.bf16.mxu0 0
          %618 = vmatmul.mubr.bf16.gmra.mrb[0].mxu0 %v555
          %v619 = vpop.f32.mrb[0].mxu0
          %v620 = vadd.f32 %v453, %v619
          %v621 = vpop.f32.mrb[0].mxu0
          %v622 = vadd.f32 %v457, %v621
          %v623 = vpop.f32.mrb[0].mxu0
          %v624 = vadd.f32 %v453, %v623
          %v625 = vpop.f32.mrb[0].mxu0
          %v626 = vadd.f32 %v457, %v625
          %627 = vmatprep.mubr.bf16.mxu0 0
          %628 = vmatmul.mubr.bf16.gmra.mrb[0].mxu0 %v558
          %v629 = vpop.f32.mrb[0].mxu0
          %v630 = vadd.f32 %v453, %v629
          %v631 = vpop.f32.mrb[0].mxu0
          %v632 = vadd.f32 %v457, %v631
          %v633 = vpop.f32.mrb[0].mxu0
          %v634 = vadd.f32 %v453, %v633
          %v635 = vpop.f32.mrb[0].mxu0
          %v636 = vadd.f32 %v457, %v635
          %637 = vmatprep.mubr.bf16.mxu0 0
          %638 = vmatmul.mubr.bf16.gmra.mrb[0].mxu0 %v561
          %v639 = vpop.f32.mrb[0].mxu0
          %v640 = vadd.f32 %v453, %v639
          %v641 = vpop.f32.mrb[0].mxu0
          %v642 = vadd.f32 %v457, %v641
          %v643 = vpop.f32.mrb[0].mxu0
          %v644 = vadd.f32 %v453, %v643
          %v645 = vpop.f32.mrb[0].mxu0
          %v646 = vadd.f32 %v457, %v645
          %647 = vmatprep.mubr.bf16.mxu0 0
          %648 = vmatmul.mubr.bf16.gmra.mrb[0].mxu0 %v564
          %v649 = vpop.f32.mrb[0].mxu0
          %v650 = vadd.f32 %v453, %v649
          %v651 = vpop.f32.mrb[0].mxu0
          %v652 = vadd.f32 %v457, %v651
          %v653 = vpop.f32.mrb[0].mxu0
          %v654 = vadd.f32 %v453, %v653
          %v655 = vpop.f32.mrb[0].mxu0
          %v656 = vadd.f32 %v457, %v655
          %657 = vmatprep.mubr.bf16.mxu0 0
          %658 = vmatmul.mubr.bf16.gmra.mrb[0].mxu0 %v567
          %v659 = vpop.f32.mrb[0].mxu0
          %v660 = vadd.f32 %v453, %v659
          %v661 = vpop.f32.mrb[0].mxu0
          %v662 = vadd.f32 %v457, %v661
          %v663 = vpop.f32.mrb[0].mxu0
          %v664 = vadd.f32 %v453, %v663
          %v665 = vpop.f32.mrb[0].mxu0
          %v666 = vadd.f32 %v457, %v665
          %667 = vmatprep.mubr.bf16.mxu0 0
          %668 = vmatmul.mubr.bf16.gmra.mrb[0].mxu0 %v570
          %v669 = vpop.f32.mrb[0].mxu0
          %v670 = vadd.f32 %v453, %v669
          %v671 = vpop.f32.mrb[0].mxu0
          %v672 = vadd.f32 %v457, %v671
          %v673 = vpop.f32.mrb[0].mxu0
          %v674 = vadd.f32 %v453, %v673
          %v675 = vpop.f32.mrb[0].mxu0
          %v676 = vadd.f32 %v457, %v675
          %677 = vmatprep.mubr.bf16.mxu0 0
          %678 = vmatmul.mubr.bf16.gmra.mrb[0].mxu0 %v573
          %v679 = vpop.f32.mrb[0].mxu0
          %v680 = vadd.f32 %v453, %v679
          %v681 = vpop.f32.mrb[0].mxu0
          %v682 = vadd.f32 %v457, %v681
          %v683 = vpop.f32.mrb[0].mxu0
          %v684 = vadd.f32 %v453, %v683
          %v685 = vpop.f32.mrb[0].mxu0
          %v686 = vadd.f32 %v457, %v685
          %687 = vdwg.mxu0
          %688 = vmatprep.subr.bf16.mxu0 %v537
          %689 = vmatpush1.bf16.msra.mxu0 %v536
          %690 = vmatprep.subr.bf16.mxu0 %v541
          %691 = vmatpush1.bf16.msra.mxu0 %v540
          %692 = vmatprep.subr.bf16.mxu0 0
          %693 = vmatpush1.bf16.msra.mxu0 0
          %694 = vmatprep.subr.bf16.mxu0 0
          %695 = vmatpush1.bf16.msra.mxu0 0
          %696 = vmatprep.subr.bf16.mxu0 0
          %697 = vmatpush1.bf16.msra.mxu0 0
          %698 = vmatprep.subr.bf16.mxu0 0
          %699 = vmatpush1.bf16.msra.mxu0 0
          %700 = vmatprep.subr.bf16.mxu0 0
          %701 = vmatpush1.bf16.msra.mxu0 0
          %702 = vmatprep.subr.bf16.mxu0 0
          %703 = vmatpush1.bf16.msra.mxu0 0
          %704 = vmatprep.subr.bf16.mxu0 0
          %705 = vmatpush1.bf16.msra.mxu0 0
          %706 = vmatprep.subr.bf16.mxu0 0
          %707 = vmatpush1.bf16.msra.mxu0 0
          %708 = vmatprep.subr.bf16.mxu0 0
          %709 = vmatpush1.bf16.msra.mxu0 0
          %710 = vmatprep.subr.bf16.mxu0 0
          %711 = vmatpush1.bf16.msra.mxu0 0
          %712 = vmatprep.subr.bf16.mxu0 0
          %713 = vmatpush1.bf16.msra.mxu0 0
          %714 = vmatprep.subr.bf16.mxu0 0
          %715 = vmatpush1.bf16.msra.mxu0 0
          %716 = vmatprep.subr.bf16.mxu0 0
          %717 = vmatpush1.bf16.msra.mxu0 0
          %718 = vmatprep.subr.bf16.mxu0 0
          %719 = vmatpush1.bf16.msra.mxu0 0
          %720 = vmatprep.mubr.bf16.mxu0 0
          %721 = vmatmul.mubr.bf16.gmra.mrb[0].mxu0 %v552
          %v722 = vpop.f32.mrb[0].mxu0
          %v723 = vadd.f32 %v461, %v722
          %v724 = vpop.f32.mrb[0].mxu0
          %v725 = vadd.f32 %v465, %v724
          %v726 = vpop.f32.mrb[0].mxu0
          %v727 = vadd.f32 %v461, %v726
          %v728 = vpop.f32.mrb[0].mxu0
          %v729 = vadd.f32 %v465, %v728
          %730 = vmatprep.mubr.bf16.mxu0 0
          %731 = vmatmul.mubr.bf16.gmra.mrb[0].mxu0 %v555
          %v732 = vpop.f32.mrb[0].mxu0
          %v733 = vadd.f32 %v461, %v732
          %v734 = vpop.f32.mrb[0].mxu0
          %v735 = vadd.f32 %v465, %v734
          %v736 = vpop.f32.mrb[0].mxu0
          %v737 = vadd.f32 %v461, %v736
          %v738 = vpop.f32.mrb[0].mxu0
          %v739 = vadd.f32 %v465, %v738
          %740 = vmatprep.mubr.bf16.mxu0 0
          %741 = vmatmul.mubr.bf16.gmra.mrb[0].mxu0 %v558
          %v742 = vpop.f32.mrb[0].mxu0
          %v743 = vadd.f32 %v461, %v742
          %v744 = vpop.f32.mrb[0].mxu0
          %v745 = vadd.f32 %v465, %v744
          %v746 = vpop.f32.mrb[0].mxu0
          %v747 = vadd.f32 %v461, %v746
          %v748 = vpop.f32.mrb[0].mxu0
          %v749 = vadd.f32 %v465, %v748
          %750 = vmatprep.mubr.bf16.mxu0 0
          %751 = vmatmul.mubr.bf16.gmra.mrb[0].mxu0 %v561
          %v752 = vpop.f32.mrb[0].mxu0
          %v753 = vadd.f32 %v461, %v752
          %v754 = vpop.f32.mrb[0].mxu0
          %v755 = vadd.f32 %v465, %v754
          %v756 = vpop.f32.mrb[0].mxu0
          %v757 = vadd.f32 %v461, %v756
          %v758 = vpop.f32.mrb[0].mxu0
          %v759 = vadd.f32 %v465, %v758
          %760 = vmatprep.mubr.bf16.mxu0 0
          %761 = vmatmul.mubr.bf16.gmra.mrb[0].mxu0 %v564
          %v762 = vpop.f32.mrb[0].mxu0
          %v763 = vadd.f32 %v461, %v762
          %v764 = vpop.f32.mrb[0].mxu0
          %v765 = vadd.f32 %v465, %v764
          %v766 = vpop.f32.mrb[0].mxu0
          %v767 = vadd.f32 %v461, %v766
          %v768 = vpop.f32.mrb[0].mxu0
          %v769 = vadd.f32 %v465, %v768
          %770 = vmatprep.mubr.bf16.mxu0 0
          %771 = vmatmul.mubr.bf16.gmra.mrb[0].mxu0 %v567
          %v772 = vpop.f32.mrb[0].mxu0
          %v773 = vadd.f32 %v461, %v772
          %v774 = vpop.f32.mrb[0].mxu0
          %v775 = vadd.f32 %v465, %v774
          %v776 = vpop.f32.mrb[0].mxu0
          %v777 = vadd.f32 %v461, %v776
          %v778 = vpop.f32.mrb[0].mxu0
          %v779 = vadd.f32 %v465, %v778
          %780 = vmatprep.mubr.bf16.mxu0 0
          %781 = vmatmul.mubr.bf16.gmra.mrb[0].mxu0 %v570
          %v782 = vpop.f32.mrb[0].mxu0
          %v783 = vadd.f32 %v461, %v782
          %v784 = vpop.f32.mrb[0].mxu0
          %v785 = vadd.f32 %v465, %v784
          %v786 = vpop.f32.mrb[0].mxu0
          %v787 = vadd.f32 %v461, %v786
          %v788 = vpop.f32.mrb[0].mxu0
          %v789 = vadd.f32 %v465, %v788
          %790 = vmatprep.mubr.bf16.mxu0 0
          %791 = vmatmul.mubr.bf16.gmra.mrb[0].mxu0 %v573
          %v792 = vpop.f32.mrb[0].mxu0
          %v793 = vadd.f32 %v461, %v792
          %v794 = vpop.f32.mrb[0].mxu0
          %v795 = vadd.f32 %v465, %v794
          %v796 = vpop.f32.mrb[0].mxu0
          %v797 = vadd.f32 %v461, %v796
          %v798 = vpop.f32.mrb[0].mxu0
          %v799 = vadd.f32 %v465, %v798
          %800 = vdwg.mxu0
          %vm801 = vcmp.gt.f32.partialorder %v610, 0.0
          %vm802 = vcmp.gt.f32.partialorder %v612, 0.0
          %vm803 = vcmp.gt.f32.partialorder %v723, 0.0
          %vm804 = vcmp.gt.f32.partialorder %v725, 0.0
          %vm805 = vcmp.gt.f32.partialorder %v614, 0.0
          %vm806 = vcmp.gt.f32.partialorder %v616, 0.0
          %vm807 = vcmp.gt.f32.partialorder %v727, 0.0
          %vm808 = vcmp.gt.f32.partialorder %v729, 0.0
          %vm809 = vcmp.gt.f32.partialorder %v620, 0.0
          %vm810 = vcmp.gt.f32.partialorder %v622, 0.0
          %vm811 = vcmp.gt.f32.partialorder %v733, 0.0
          %vm812 = vcmp.gt.f32.partialorder %v735, 0.0
          %vm813 = vcmp.gt.f32.partialorder %v624, 0.0
          %vm814 = vcmp.gt.f32.partialorder %v626, 0.0
          %vm815 = vcmp.gt.f32.partialorder %v737, 0.0
          %vm816 = vcmp.gt.f32.partialorder %v739, 0.0
          %vm817 = vcmp.gt.f32.partialorder %v630, 0.0
          %vm818 = vcmp.gt.f32.partialorder %v632, 0.0
          %vm819 = vcmp.gt.f32.partialorder %v743, 0.0
          %vm820 = vcmp.gt.f32.partialorder %v745, 0.0
          %vm821 = vcmp.gt.f32.partialorder %v634, 0.0
          %vm822 = vcmp.gt.f32.partialorder %v636, 0.0
          %vm823 = vcmp.gt.f32.partialorder %v747, 0.0
          %vm824 = vcmp.gt.f32.partialorder %v749, 0.0
          %vm825 = vcmp.gt.f32.partialorder %v640, 0.0
          %vm826 = vcmp.gt.f32.partialorder %v642, 0.0
          %vm827 = vcmp.gt.f32.partialorder %v753, 0.0
          %vm828 = vcmp.gt.f32.partialorder %v755, 0.0
          %vm829 = vcmp.gt.f32.partialorder %v644, 0.0
          %vm830 = vcmp.gt.f32.partialorder %v646, 0.0
          %vm831 = vcmp.gt.f32.partialorder %v757, 0.0
          %vm832 = vcmp.gt.f32.partialorder %v759, 0.0
          %vm833 = vcmp.gt.f32.partialorder %v650, 0.0
          %vm834 = vcmp.gt.f32.partialorder %v652, 0.0
          %vm835 = vcmp.gt.f32.partialorder %v763, 0.0
          %vm836 = vcmp.gt.f32.partialorder %v765, 0.0
          %vm837 = vcmp.gt.f32.partialorder %v654, 0.0
          %vm838 = vcmp.gt.f32.partialorder %v656, 0.0
          %vm839 = vcmp.gt.f32.partialorder %v767, 0.0
          %vm840 = vcmp.gt.f32.partialorder %v769, 0.0
          %vm841 = vcmp.gt.f32.partialorder %v660, 0.0
          %vm842 = vcmp.gt.f32.partialorder %v662, 0.0
          %vm843 = vcmp.gt.f32.partialorder %v773, 0.0
          %vm844 = vcmp.gt.f32.partialorder %v775, 0.0
          %vm845 = vcmp.gt.f32.partialorder %v664, 0.0
          %vm846 = vcmp.gt.f32.partialorder %v666, 0.0
          %vm847 = vcmp.gt.f32.partialorder %v777, 0.0
          %vm848 = vcmp.gt.f32.partialorder %v779, 0.0
          %vm849 = vcmp.gt.f32.partialorder %v670, 0.0
          %vm850 = vcmp.gt.f32.partialorder %v672, 0.0
          %vm851 = vcmp.gt.f32.partialorder %v783, 0.0
          %vm852 = vcmp.gt.f32.partialorder %v785, 0.0
          %vm853 = vcmp.gt.f32.partialorder %v674, 0.0
          %vm854 = vcmp.gt.f32.partialorder %v676, 0.0
          %vm855 = vcmp.gt.f32.partialorder %v787, 0.0
          %vm856 = vcmp.gt.f32.partialorder %v789, 0.0
          %vm857 = vcmp.gt.f32.partialorder %v680, 0.0
          %vm858 = vcmp.gt.f32.partialorder %v682, 0.0
          %vm859 = vcmp.gt.f32.partialorder %v793, 0.0
          %vm860 = vcmp.gt.f32.partialorder %v795, 0.0
          %vm861 = vcmp.gt.f32.partialorder %v684, 0.0
          %vm862 = vcmp.gt.f32.partialorder %v686, 0.0
          %vm863 = vcmp.gt.f32.partialorder %v797, 0.0
          %vm864 = vcmp.gt.f32.partialorder %v799, 0.0
          %v865 = vmul.f32 %v610, 0.1
          %v866 = vmul.f32 %v612, 0.1
          %v867 = vmul.f32 %v723, 0.1
          %v868 = vmul.f32 %v725, 0.1
          %v869 = vmul.f32 %v614, 0.1
          %v870 = vmul.f32 %v616, 0.1
          %v871 = vmul.f32 %v727, 0.1
          %v872 = vmul.f32 %v729, 0.1
          %v873 = vmul.f32 %v620, 0.1
          %v874 = vmul.f32 %v622, 0.1
          %v875 = vmul.f32 %v733, 0.1
          %v876 = vmul.f32 %v735, 0.1
          %v877 = vmul.f32 %v624, 0.1
          %v878 = vmul.f32 %v626, 0.1
          %v879 = vmul.f32 %v737, 0.1
          %v880 = vmul.f32 %v739, 0.1
          %v881 = vmul.f32 %v630, 0.1
          %v882 = vmul.f32 %v632, 0.1
          %v883 = vmul.f32 %v743, 0.1
          %v884 = vmul.f32 %v745, 0.1
          %v885 = vmul.f32 %v634, 0.1
          %v886 = vmul.f32 %v636, 0.1
          %v887 = vmul.f32 %v747, 0.1
          %v888 = vmul.f32 %v749, 0.1
          %v889 = vmul.f32 %v640, 0.1
          %v890 = vmul.f32 %v642, 0.1
          %v891 = vmul.f32 %v753, 0.1
          %v892 = vmul.f32 %v755, 0.1
          %v893 = vmul.f32 %v644, 0.1
          %v894 = vmul.f32 %v646, 0.1
          %v895 = vmul.f32 %v757, 0.1
          %v896 = vmul.f32 %v759, 0.1
          %v897 = vmul.f32 %v650, 0.1
          %v898 = vmul.f32 %v652, 0.1
          %v899 = vmul.f32 %v763, 0.1
          %v900 = vmul.f32 %v765, 0.1
          %v901 = vmul.f32 %v654, 0.1
          %v902 = vmul.f32 %v656, 0.1
          %v903 = vmul.f32 %v767, 0.1
          %v904 = vmul.f32 %v769, 0.1
          %v905 = vmul.f32 %v660, 0.1
          %v906 = vmul.f32 %v662, 0.1
          %v907 = vmul.f32 %v773, 0.1
          %v908 = vmul.f32 %v775, 0.1
          %v909 = vmul.f32 %v664, 0.1
          %v910 = vmul.f32 %v666, 0.1
          %v911 = vmul.f32 %v777, 0.1
          %v912 = vmul.f32 %v779, 0.1
          %v913 = vmul.f32 %v670, 0.1
          %v914 = vmul.f32 %v672, 0.1
          %v915 = vmul.f32 %v783, 0.1
          %v916 = vmul.f32 %v785, 0.1
          %v917 = vmul.f32 %v674, 0.1
          %v918 = vmul.f32 %v676, 0.1
          %v919 = vmul.f32 %v787, 0.1
          %v920 = vmul.f32 %v789, 0.1
          %v921 = vmul.f32 %v680, 0.1
          %v922 = vmul.f32 %v682, 0.1
          %v923 = vmul.f32 %v793, 0.1
          %v924 = vmul.f32 %v795, 0.1
          %v925 = vmul.f32 %v684, 0.1
          %v926 = vmul.f32 %v686, 0.1
          %v927 = vmul.f32 %v797, 0.1
          %v928 = vmul.f32 %v799, 0.1
          %v929 = vsel %vm801, %v610, %v865
          %v930 = vsel %vm802, %v612, %v866
          %v931 = vsel %vm803, %v723, %v867
          %v932 = vsel %vm804, %v725, %v868
          %v933 = vsel %vm805, %v614, %v869
          %v934 = vsel %vm806, %v616, %v870
          %v935 = vsel %vm807, %v727, %v871
          %v936 = vsel %vm808, %v729, %v872
          %v937 = vsel %vm809, %v620, %v873
          %v938 = vsel %vm810, %v622, %v874
          %v939 = vsel %vm811, %v733, %v875
          %v940 = vsel %vm812, %v735, %v876
          %v941 = vsel %vm813, %v624, %v877
          %v942 = vsel %vm814, %v626, %v878
          %v943 = vsel %vm815, %v737, %v879
          %v944 = vsel %vm816, %v739, %v880
          %v945 = vsel %vm817, %v630, %v881
          %v946 = vsel %vm818, %v632, %v882
          %v947 = vsel %vm819, %v743, %v883
          %v948 = vsel %vm820, %v745, %v884
          %v949 = vsel %vm821, %v634, %v885
          %v950 = vsel %vm822, %v636, %v886
          %v951 = vsel %vm823, %v747, %v887
          %v952 = vsel %vm824, %v749, %v888
          %v953 = vsel %vm825, %v640, %v889
          %v954 = vsel %vm826, %v642, %v890
          %v955 = vsel %vm827, %v753, %v891
          %v956 = vsel %vm828, %v755, %v892
          %v957 = vsel %vm829, %v644, %v893
          %v958 = vsel %vm830, %v646, %v894
          %v959 = vsel %vm831, %v757, %v895
          %v960 = vsel %vm832, %v759, %v896
          %v961 = vsel %vm833, %v650, %v897
          %v962 = vsel %vm834, %v652, %v898
          %v963 = vsel %vm835, %v763, %v899
          %v964 = vsel %vm836, %v765, %v900
          %v965 = vsel %vm837, %v654, %v901
          %v966 = vsel %vm838, %v656, %v902
          %v967 = vsel %vm839, %v767, %v903
          %v968 = vsel %vm840, %v769, %v904
          %v969 = vsel %vm841, %v660, %v905
          %v970 = vsel %vm842, %v662, %v906
          %v971 = vsel %vm843, %v773, %v907
          %v972 = vsel %vm844, %v775, %v908
          %v973 = vsel %vm845, %v664, %v909
          %v974 = vsel %vm846, %v666, %v910
          %v975 = vsel %vm847, %v777, %v911
          %v976 = vsel %vm848, %v779, %v912
          %v977 = vsel %vm849, %v670, %v913
          %v978 = vsel %vm850, %v672, %v914
          %v979 = vsel %vm851, %v783, %v915
          %v980 = vsel %vm852, %v785, %v916
          %v981 = vsel %vm853, %v674, %v917
          %v982 = vsel %vm854, %v676, %v918
          %v983 = vsel %vm855, %v787, %v919
          %v984 = vsel %vm856, %v789, %v920
          %v985 = vsel %vm857, %v680, %v921
          %v986 = vsel %vm858, %v682, %v922
          %v987 = vsel %vm859, %v793, %v923
          %v988 = vsel %vm860, %v795, %v924
          %v989 = vsel %vm861, %v684, %v925
          %v990 = vsel %vm862, %v686, %v926
          %v991 = vsel %vm863, %v797, %v927
          %v992 = vsel %vm864, %v799, %v928
          %v993 = vpack.c.bf16 %v933, %v929
          %v994 = vpack.c.bf16 %v934, %v930
          %v995 = vpack.c.bf16 %v935, %v931
          %v996 = vpack.c.bf16 %v936, %v932
          %v997 = vpack.c.bf16 %v941, %v937
          %v998 = vpack.c.bf16 %v942, %v938
          %v999 = vpack.c.bf16 %v943, %v939
          %v1000 = vpack.c.bf16 %v944, %v940
          %v1001 = vpack.c.bf16 %v949, %v945
          %v1002 = vpack.c.bf16 %v950, %v946
          %v1003 = vpack.c.bf16 %v951, %v947
          %v1004 = vpack.c.bf16 %v952, %v948
          %v1005 = vpack.c.bf16 %v957, %v953
          %v1006 = vpack.c.bf16 %v958, %v954
          %v1007 = vpack.c.bf16 %v959, %v955
          %v1008 = vpack.c.bf16 %v960, %v956
          %v1009 = vpack.c.bf16 %v965, %v961
          %v1010 = vpack.c.bf16 %v966, %v962
          %v1011 = vpack.c.bf16 %v967, %v963
          %v1012 = vpack.c.bf16 %v968, %v964
          %v1013 = vpack.c.bf16 %v973, %v969
          %v1014 = vpack.c.bf16 %v974, %v970
          %v1015 = vpack.c.bf16 %v975, %v971
          %v1016 = vpack.c.bf16 %v976, %v972
          %v1017 = vpack.c.bf16 %v981, %v977
          %v1018 = vpack.c.bf16 %v982, %v978
          %v1019 = vpack.c.bf16 %v983, %v979
          %v1020 = vpack.c.bf16 %v984, %v980
          %v1021 = vpack.c.bf16 %v989, %v985
          %v1022 = vpack.c.bf16 %v990, %v986
          %v1023 = vpack.c.bf16 %v991, %v987
          %v1024 = vpack.c.bf16 %v992, %v988
          %1025 = vst [vmem:[#allocation2] sm:$0xff] %v993
          %1026 = vst [vmem:[#allocation2 + $0x8] sm:$0xff] %v994
          %1027 = vst [vmem:[#allocation2 + $0x10] sm:$0xff] %v995
          %1028 = vst [vmem:[#allocation2 + $0x18] sm:$0xff] %v996
          %1029 = vst [vmem:[#allocation2 + $0x20] sm:$0xff] %v997
          %1030 = vst [vmem:[#allocation2 + $0x28] sm:$0xff] %v998
          %1031 = vst [vmem:[#allocation2 + $0x30] sm:$0xff] %v999
          %1032 = vst [vmem:[#allocation2 + $0x38] sm:$0xff] %v1000
          %1033 = vst [vmem:[#allocation2 + $0x40] sm:$0xff] %v1001
          %1034 = vst [vmem:[#allocation2 + $0x48] sm:$0xff] %v1002
          %1035 = vst [vmem:[#allocation2 + $0x50] sm:$0xff] %v1003
          %1036 = vst [vmem:[#allocation2 + $0x58] sm:$0xff] %v1004
          %1037 = vst [vmem:[#allocation2 + $0x60] sm:$0xff] %v1005
          %1038 = vst [vmem:[#allocation2 + $0x68] sm:$0xff] %v1006
          %1039 = vst [vmem:[#allocation2 + $0x70] sm:$0xff] %v1007
          %1040 = vst [vmem:[#allocation2 + $0x78] sm:$0xff] %v1008
          %1041 = vst [vmem:[#allocation2 + $0x80] sm:$0xff] %v1009
          %1042 = vst [vmem:[#allocation2 + $0x88] sm:$0xff] %v1010
          %1043 = vst [vmem:[#allocation2 + $0x90] sm:$0xff] %v1011
          %1044 = vst [vmem:[#allocation2 + $0x98] sm:$0xff] %v1012
          %1045 = vst [vmem:[#allocation2 + $0xa0] sm:$0xff] %v1013
          %1046 = vst [vmem:[#allocation2 + $0xa8] sm:$0xff] %v1014
          %1047 = vst [vmem:[#allocation2 + $0xb0] sm:$0xff] %v1015
          %1048 = vst [vmem:[#allocation2 + $0xb8] sm:$0xff] %v1016
          %1049 = vst [vmem:[#allocation2 + $0xc0] sm:$0xff] %v1017
          %1050 = vst [vmem:[#allocation2 + $0xc8] sm:$0xff] %v1018
          %1051 = vst [vmem:[#allocation2 + $0xd0] sm:$0xff] %v1019
          %1052 = vst [vmem:[#allocation2 + $0xd8] sm:$0xff] %v1020
          %1053 = vst [vmem:[#allocation2 + $0xe0] sm:$0xff] %v1021
          %1054 = vst [vmem:[#allocation2 + $0xe8] sm:$0xff] %v1022
          %1055 = vst [vmem:[#allocation2 + $0xf0] sm:$0xff] %v1023
          %1056 = vst [vmem:[#allocation2 + $0xf8] sm:$0xff] %v1024
          %v1057 = vld [vmem:[%s4] sm:$0xf]
          %v1058 = vld [vmem:[%s4 + $0x4] sm:$0xf]
          %v1059 = vld [vmem:[%s4 + $0x8] sm:$0xf]
          %v1060 = vld [vmem:[%s4 + $0xc] sm:$0xf]
          %v1061 = vld [vmem:[%s4 + $0x10] sm:$0xf]
          %v1062 = vld [vmem:[%s4 + $0x14] sm:$0xf]
          %v1063 = vld [vmem:[%s4 + $0x18] sm:$0xf]
          %v1064 = vld [vmem:[%s4 + $0x1c] sm:$0xf]
          %v1065 = vld [vmem:[%s4 + $0x20] sm:$0xf]
          %v1066 = vld [vmem:[%s4 + $0x24] sm:$0xf]
          %v1067 = vld [vmem:[%s4 + $0x28] sm:$0xf]
          %v1068 = vld [vmem:[%s4 + $0x2c] sm:$0xf]
          %v1069 = vld [vmem:[%s4 + $0x30] sm:$0xf]
          %v1070 = vld [vmem:[%s4 + $0x34] sm:$0xf]
          %v1071 = vld [vmem:[%s4 + $0x38] sm:$0xf]
          %v1072 = vld [vmem:[%s4 + $0x3c] sm:$0xf]
          %v1073 = vld [vmem:[%s5] sm:$0x1]
          %v1075 = vlaneseq
          %v1076 = vshrl.u32 %v1075, 7
          %v1077 = vsub.s32 0, %v1076
          %v1078 = vrot.slane %v1073, %v1077
          %v1096 = vunpack.c.l.b16 %v1057
          %v1097 = vunpack.c.l.b16 %v1058
          %v1098 = vunpack.c.l.b16 %v1059
          %v1099 = vunpack.c.l.b16 %v1060
          %v1100 = vunpack.c.l.b16 %v1061
          %v1101 = vunpack.c.l.b16 %v1062
          %v1102 = vunpack.c.l.b16 %v1063
          %v1103 = vunpack.c.l.b16 %v1064
          %v1104 = vunpack.c.l.b16 %v1065
          %v1105 = vunpack.c.l.b16 %v1066
          %v1106 = vunpack.c.l.b16 %v1067
          %v1107 = vunpack.c.l.b16 %v1068
          %v1108 = vunpack.c.l.b16 %v1069
          %v1109 = vunpack.c.l.b16 %v1070
          %v1110 = vunpack.c.l.b16 %v1071
          %v1111 = vunpack.c.l.b16 %v1072
          %v1112 = vpack.c.b16 %v1097, %v1096
          %v1113 = vpack.c.b16 %v1099, %v1098
          %v1114 = vpack.c.b16 %v1101, %v1100
          %v1115 = vpack.c.b16 %v1103, %v1102
          %v1116 = vpack.c.b16 %v1105, %v1104
          %v1117 = vpack.c.b16 %v1107, %v1106
          %v1118 = vpack.c.b16 %v1109, %v1108
          %v1119 = vpack.c.b16 %v1111, %v1110
          %1128 = vmatprep.subr.bf16.mxu0 0
          %1129 = vmatpush1.bf16.msra.mxu0 %v1112
          %1130 = vmatprep.subr.bf16.mxu0 0
          %1131 = vmatpush1.bf16.msra.mxu0 %v1113
          %1132 = vmatprep.subr.bf16.mxu0 0
          %1133 = vmatpush1.bf16.msra.mxu0 %v1114
          %1134 = vmatprep.subr.bf16.mxu0 0
          %1135 = vmatpush1.bf16.msra.mxu0 %v1115
          %1136 = vmatprep.subr.bf16.mxu0 0
          %1137 = vmatpush1.bf16.msra.mxu0 %v1116
          %1138 = vmatprep.subr.bf16.mxu0 0
          %1139 = vmatpush1.bf16.msra.mxu0 %v1117
          %1140 = vmatprep.subr.bf16.mxu0 0
          %1141 = vmatpush1.bf16.msra.mxu0 %v1118
          %1142 = vmatprep.subr.bf16.mxu0 0
          %1143 = vmatpush1.bf16.msra.mxu0 %v1119
          %1144 = vmatprep.subr.bf16.mxu0 0
          %1145 = vmatpush1.bf16.msra.mxu0 0
          %1146 = vmatprep.subr.bf16.mxu0 0
          %1147 = vmatpush1.bf16.msra.mxu0 0
          %1148 = vmatprep.subr.bf16.mxu0 0
          %1149 = vmatpush1.bf16.msra.mxu0 0
          %1150 = vmatprep.subr.bf16.mxu0 0
          %1151 = vmatpush1.bf16.msra.mxu0 0
          %1152 = vmatprep.subr.bf16.mxu0 0
          %1153 = vmatpush1.bf16.msra.mxu0 0
          %1154 = vmatprep.subr.bf16.mxu0 0
          %1155 = vmatpush1.bf16.msra.mxu0 0
          %1156 = vmatprep.subr.bf16.mxu0 0
          %1157 = vmatpush1.bf16.msra.mxu0 0
          %1158 = vmatprep.subr.bf16.mxu0 0
          %1159 = vmatpush1.bf16.msra.mxu0 0
          %1160 = vmatprep.mubr.bf16.mxu0 0
          %1161 = vmatmul.mubr.bf16.gmra.mrb[0].mxu0 %v993
          %v1162 = vpop.f32.mrb[0].mxu0
          %v1163 = vadd.f32 %v1078, %v1162
          %v1164 = vpop.f32.mrb[0].mxu0
          %v1165 = vpop.f32.mrb[0].mxu0
          %v1166 = vpop.f32.mrb[0].mxu0
          %1167 = vdwg.mxu0
          %v1168 = vpack.c.bf16 %v1163, %v1163
          %1169 = vmatprep.subr.bf16.mxu0 0
          %1170 = vmatpush1.bf16.xpose.msra.mxu0 %v994
          %1171 = vmatprep.subr.bf16.mxu0 0
          %1172 = vmatpush1.bf16.xpose.msra.mxu0 %v998
          %1173 = vmatprep.subr.bf16.mxu0 0
          %1174 = vmatpush1.bf16.xpose.msra.mxu0 %v1002
          %1175 = vmatprep.subr.bf16.mxu0 0
          %1176 = vmatpush1.bf16.xpose.msra.mxu0 %v1006
          %1177 = vmatprep.subr.bf16.mxu0 0
          %1178 = vmatpush1.bf16.xpose.msra.mxu0 %v1010
          %1179 = vmatprep.subr.bf16.mxu0 0
          %1180 = vmatpush1.bf16.xpose.msra.mxu0 %v1014
          %1181 = vmatprep.subr.bf16.mxu0 0
          %1182 = vmatpush1.bf16.xpose.msra.mxu0 %v1018
          %1183 = vmatprep.subr.bf16.mxu0 0
          %1184 = vmatpush1.bf16.xpose.msra.mxu0 %v1022
          %1185 = vmatprep.subr.bf16.mxu0 0
          %1186 = vmatpush1.bf16.xpose.msra.mxu0 0
          %1187 = vmatprep.subr.bf16.mxu0 0
          %1188 = vmatpush1.bf16.xpose.msra.mxu0 0
          %1189 = vmatprep.subr.bf16.mxu0 0
          %1190 = vmatpush1.bf16.xpose.msra.mxu0 0
          %1191 = vmatprep.subr.bf16.mxu0 0
          %1192 = vmatpush1.bf16.xpose.msra.mxu0 0
          %1193 = vmatprep.subr.bf16.mxu0 0
          %1194 = vmatpush1.bf16.xpose.msra.mxu0 0
          %1195 = vmatprep.subr.bf16.mxu0 0
          %1196 = vmatpush1.bf16.xpose.msra.mxu0 0
          %1197 = vmatprep.subr.bf16.mxu0 0
          %1198 = vmatpush1.bf16.xpose.msra.mxu0 0
          %1199 = vmatprep.subr.bf16.mxu0 0
          %1200 = vmatpush1.bf16.xpose.msra.mxu0 0
          %1201 = vmatprep.mubr.bf16.mxu0 0
          %1202 = vmatmul.mubr.bf16.gmra.mrb[0].mxu0 %v1168
          %v1203 = vpop.f32.mrb[0].mxu0
          %v1204 = vadd.f32 0.0, %v1203
          %v1205 = vpop.f32.mrb[0].mxu0
          %v1206 = vpop.f32.mrb[0].mxu0
          %v1207 = vpop.f32.mrb[0].mxu0
          %1208 = vdwg.mxu0
          %v1209 = vld [vmem:[%s399] sm:$0x1]
          %vm1210 = vcmp.gt.f32.partialorder %v1209, 0.0
          %v1211 = vsel %vm1210, 1, 0
          %v1212 = vlaneseq
          %v1213 = vshrl.u32 %v1212, 7
          %v1214 = vsub.s32 0, %v1213
          %v1215 = vrot.slane %v1211, %v1214
          %vm1216 = vcmp.eq.s32.totalorder %v1215, 1
          %v1217 = vsel %vm1216, %v1204, -inf
          %1218 = vst [vmem:[%s381] sm:$0xff] %v1217
        $region56: #{biaffine_decoder_forward.1} parent=51 // pred_fallthru
          _
        %v1219 = vld [vmem:[#allocation2 + $0x10] sm:$0xf]
        %v1220 = vld [vmem:[#allocation2 + $0x18] sm:$0xff]
        %v1221 = vld [vmem:[#allocation2 + $0x38] sm:$0xff]
        %v1222 = vld [vmem:[#allocation2 + $0x58] sm:$0xff]
        %v1223 = vld [vmem:[#allocation2 + $0x78] sm:$0xff]
        %v1224 = vld [vmem:[#allocation2 + $0x98] sm:$0xff]
        %v1225 = vld [vmem:[#allocation2 + $0xb8] sm:$0xff]
        %v1226 = vld [vmem:[#allocation2 + $0xd8] sm:$0xff]
        %v1227 = vld [vmem:[#allocation2 + $0xf8] sm:$0xff]
        %v1228 = vld [vmem:[%s404] sm:$0xff]
        %v1229 = vld [vmem:[%s404 + $0x8] sm:$0xff]
        %v1230 = vld [vmem:[%s404 + $0x10] sm:$0xff]
        %v1231 = vld [vmem:[%s404 + $0x18] sm:$0xff]
        %v1232 = vld [vmem:[%s404 + $0x20] sm:$0xff]
        %v1233 = vld [vmem:[%s404 + $0x28] sm:$0xff]
        %v1234 = vld [vmem:[%s404 + $0x30] sm:$0xff]
        %v1235 = vld [vmem:[%s404 + $0x38] sm:$0xff]
        %v1236 = vld [vmem:[%s404 + $0x40] sm:$0xff]
        %v1237 = vld [vmem:[%s404 + $0x48] sm:$0xff]
        %v1238 = vld [vmem:[%s404 + $0x50] sm:$0xff]
        %v1239 = vld [vmem:[%s404 + $0x58] sm:$0xff]
        %v1240 = vld [vmem:[%s404 + $0x60] sm:$0xff]
        %v1241 = vld [vmem:[%s404 + $0x68] sm:$0xff]
        %v1242 = vld [vmem:[%s404 + $0x70] sm:$0xff]
        %v1243 = vld [vmem:[%s404 + $0x78] sm:$0xff]
        %v1244 = vld [vmem:[%s404 + $0x80] sm:$0xff]
        %v1245 = vld [vmem:[%s404 + $0x88] sm:$0xff]
        %v1246 = vld [vmem:[%s404 + $0x90] sm:$0xff]
        %v1247 = vld [vmem:[%s404 + $0x98] sm:$0xff]
        %v1248 = vld [vmem:[%s404 + $0xa0] sm:$0xff]
        %v1249 = vld [vmem:[%s404 + $0xa8] sm:$0xff]
        %v1250 = vld [vmem:[%s404 + $0xb0] sm:$0xff]
        %v1251 = vld [vmem:[%s404 + $0xb8] sm:$0xff]
        %v1252 = vld [vmem:[%s404 + $0xc0] sm:$0xff]
        %v1253 = vld [vmem:[%s404 + $0xc8] sm:$0xff]
        %v1254 = vld [vmem:[%s404 + $0xd0] sm:$0xff]
        %v1255 = vld [vmem:[%s404 + $0xd8] sm:$0xff]
        %v1256 = vld [vmem:[%s404 + $0xe0] sm:$0xff]
        %v1257 = vld [vmem:[%s404 + $0xe8] sm:$0xff]
        %v1258 = vld [vmem:[%s404 + $0xf0] sm:$0xff]
        %v1259 = vld [vmem:[%s404 + $0xf8] sm:$0xff]
        %v1260 = vld [vmem:[%s404 + $0x100] sm:$0xff]
        %v1261 = vld [vmem:[%s404 + $0x108] sm:$0xff]
        %v1262 = vld [vmem:[%s404 + $0x110] sm:$0xff]
        %v1263 = vld [vmem:[%s404 + $0x118] sm:$0xff]
        %v1264 = vld [vmem:[%s404 + $0x120] sm:$0xff]
        %v1265 = vld [vmem:[%s404 + $0x128] sm:$0xff]
        %v1266 = vld [vmem:[%s404 + $0x130] sm:$0xff]
        %v1267 = vld [vmem:[%s404 + $0x138] sm:$0xff]
        %v1268 = vld [vmem:[%s404 + $0x140] sm:$0xff]
        %v1269 = vld [vmem:[%s404 + $0x148] sm:$0xff]
        %v1270 = vld [vmem:[%s404 + $0x150] sm:$0xff]
        %v1271 = vld [vmem:[%s404 + $0x158] sm:$0xff]
        %v1272 = vld [vmem:[%s404 + $0x160] sm:$0xff]
        %v1273 = vld [vmem:[%s404 + $0x168] sm:$0xff]
        %v1274 = vld [vmem:[%s404 + $0x170] sm:$0xff]
        %v1275 = vld [vmem:[%s404 + $0x178] sm:$0xff]
        %v1276 = vld [vmem:[%s404 + $0x180] sm:$0xff]
        %v1277 = vld [vmem:[%s404 + $0x188] sm:$0xff]
        %v1278 = vld [vmem:[%s404 + $0x190] sm:$0xff]
        %v1279 = vld [vmem:[%s404 + $0x198] sm:$0xff]
        %v1280 = vld [vmem:[%s404 + $0x1a0] sm:$0xff]
        %v1281 = vld [vmem:[%s404 + $0x1a8] sm:$0xff]
        %v1282 = vld [vmem:[%s404 + $0x1b0] sm:$0xff]
        %v1283 = vld [vmem:[%s404 + $0x1b8] sm:$0xff]
        %v1284 = vld [vmem:[%s404 + $0x1c0] sm:$0xff]
        %v1285 = vld [vmem:[%s404 + $0x1c8] sm:$0xff]
        %v1286 = vld [vmem:[%s404 + $0x1d0] sm:$0xff]
        %v1287 = vld [vmem:[%s404 + $0x1d8] sm:$0xff]
        %v1288 = vld [vmem:[%s404 + $0x1e0] sm:$0xff]
        %v1289 = vld [vmem:[%s404 + $0x1e8] sm:$0xff]
        %v1290 = vld [vmem:[%s404 + $0x1f0] sm:$0xff]
        %v1291 = vld [vmem:[%s404 + $0x1f8] sm:$0xff]
        %v1292 = vld [vmem:[%s409] sm:$0xff]
        %v1294 = vlaneseq
        %v1295 = vshrl.u32 %v1294, 7
        %v1296 = vsub.s32 0, %v1295
        %v1297 = vrot.slane %v1292, %v1296
        %v1298 = vlaneseq
        %v1299 = vshrl.u32 %v1298, 7
        %v1300 = vsub.s32 1, %v1299
        %v1301 = vrot.slane %v1292, %v1300
        %v1302 = vlaneseq
        %v1303 = vshrl.u32 %v1302, 7
        %v1304 = vsub.s32 2, %v1303
        %v1305 = vrot.slane %v1292, %v1304
        %v1306 = vlaneseq
        %v1307 = vshrl.u32 %v1306, 7
        %v1308 = vsub.s32 3, %v1307
        %v1309 = vrot.slane %v1292, %v1308
        %v1310 = vlaneseq
        %v1311 = vshrl.u32 %v1310, 7
        %v1312 = vsub.s32 4, %v1311
        %v1313 = vrot.slane %v1292, %v1312
        %v1314 = vlaneseq
        %v1315 = vshrl.u32 %v1314, 7
        %v1316 = vsub.s32 5, %v1315
        %v1317 = vrot.slane %v1292, %v1316
        %v1318 = vlaneseq
        %v1319 = vshrl.u32 %v1318, 7
        %v1320 = vsub.s32 6, %v1319
        %v1321 = vrot.slane %v1292, %v1320
        %v1322 = vlaneseq
        %v1323 = vshrl.u32 %v1322, 7
        %v1324 = vsub.s32 7, %v1323
        %v1325 = vrot.slane %v1292, %v1324
        %v1398 = vunpack.c.l.b16 %v1228
        %v1399 = vunpack.c.h.b16 %v1228
        %v1400 = vunpack.c.l.b16 %v1229
        %v1401 = vunpack.c.h.b16 %v1229
        %v1402 = vunpack.c.l.b16 %v1230
        %v1403 = vunpack.c.h.b16 %v1230
        %v1404 = vunpack.c.l.b16 %v1231
        %v1405 = vunpack.c.h.b16 %v1231
        %v1406 = vunpack.c.l.b16 %v1232
        %v1407 = vunpack.c.h.b16 %v1232
        %v1408 = vunpack.c.l.b16 %v1233
        %v1409 = vunpack.c.h.b16 %v1233
        %v1410 = vunpack.c.l.b16 %v1234
        %v1411 = vunpack.c.h.b16 %v1234
        %v1412 = vunpack.c.l.b16 %v1235
        %v1413 = vunpack.c.h.b16 %v1235
        %v1414 = vunpack.c.l.b16 %v1236
        %v1415 = vunpack.c.h.b16 %v1236
        %v1416 = vunpack.c.l.b16 %v1237
        %v1417 = vunpack.c.h.b16 %v1237
        %v1418 = vunpack.c.l.b16 %v1238
        %v1419 = vunpack.c.h.b16 %v1238
        %v1420 = vunpack.c.l.b16 %v1239
        %v1421 = vunpack.c.h.b16 %v1239
        %v1422 = vunpack.c.l.b16 %v1240
        %v1423 = vunpack.c.h.b16 %v1240
        %v1424 = vunpack.c.l.b16 %v1241
        %v1425 = vunpack.c.h.b16 %v1241
        %v1426 = vunpack.c.l.b16 %v1242
        %v1427 = vunpack.c.h.b16 %v1242
        %v1428 = vunpack.c.l.b16 %v1243
        %v1429 = vunpack.c.h.b16 %v1243
        %v1430 = vunpack.c.l.b16 %v1244
        %v1431 = vunpack.c.h.b16 %v1244
        %v1432 = vunpack.c.l.b16 %v1245
        %v1433 = vunpack.c.h.b16 %v1245
        %v1434 = vunpack.c.l.b16 %v1246
        %v1435 = vunpack.c.h.b16 %v1246
        %v1436 = vunpack.c.l.b16 %v1247
        %v1437 = vunpack.c.h.b16 %v1247
        %v1438 = vunpack.c.l.b16 %v1248
        %v1439 = vunpack.c.h.b16 %v1248
        %v1440 = vunpack.c.l.b16 %v1249
        %v1441 = vunpack.c.h.b16 %v1249
        %v1442 = vunpack.c.l.b16 %v1250
        %v1443 = vunpack.c.h.b16 %v1250
        %v1444 = vunpack.c.l.b16 %v1251
        %v1445 = vunpack.c.h.b16 %v1251
        %v1446 = vunpack.c.l.b16 %v1252
        %v1447 = vunpack.c.h.b16 %v1252
        %v1448 = vunpack.c.l.b16 %v1253
        %v1449 = vunpack.c.h.b16 %v1253
        %v1450 = vunpack.c.l.b16 %v1254
        %v1451 = vunpack.c.h.b16 %v1254
        %v1452 = vunpack.c.l.b16 %v1255
        %v1453 = vunpack.c.h.b16 %v1255
        %v1454 = vunpack.c.l.b16 %v1256
        %v1455 = vunpack.c.h.b16 %v1256
        %v1456 = vunpack.c.l.b16 %v1257
        %v1457 = vunpack.c.h.b16 %v1257
        %v1458 = vunpack.c.l.b16 %v1258
        %v1459 = vunpack.c.h.b16 %v1258
        %v1460 = vunpack.c.l.b16 %v1259
        %v1461 = vunpack.c.h.b16 %v1259
        %v1462 = vunpack.c.l.b16 %v1260
        %v1463 = vunpack.c.h.b16 %v1260
        %v1464 = vunpack.c.l.b16 %v1261
        %v1465 = vunpack.c.h.b16 %v1261
        %v1466 = vunpack.c.l.b16 %v1262
        %v1467 = vunpack.c.h.b16 %v1262
        %v1468 = vunpack.c.l.b16 %v1263
        %v1469 = vunpack.c.h.b16 %v1263
        %v1470 = vunpack.c.l.b16 %v1264
        %v1471 = vunpack.c.h.b16 %v1264
        %v1472 = vunpack.c.l.b16 %v1265
        %v1473 = vunpack.c.h.b16 %v1265
        %v1474 = vunpack.c.l.b16 %v1266
        %v1475 = vunpack.c.h.b16 %v1266
        %v1476 = vunpack.c.l.b16 %v1267
        %v1477 = vunpack.c.h.b16 %v1267
        %v1478 = vunpack.c.l.b16 %v1268
        %v1479 = vunpack.c.h.b16 %v1268
        %v1480 = vunpack.c.l.b16 %v1269
        %v1481 = vunpack.c.h.b16 %v1269
        %v1482 = vunpack.c.l.b16 %v1270
        %v1483 = vunpack.c.h.b16 %v1270
        %v1484 = vunpack.c.l.b16 %v1271
        %v1485 = vunpack.c.h.b16 %v1271
        %v1486 = vunpack.c.l.b16 %v1272
        %v1487 = vunpack.c.h.b16 %v1272
        %v1488 = vunpack.c.l.b16 %v1273
        %v1489 = vunpack.c.h.b16 %v1273
        %v1490 = vunpack.c.l.b16 %v1274
        %v1491 = vunpack.c.h.b16 %v1274
        %v1492 = vunpack.c.l.b16 %v1275
        %v1493 = vunpack.c.h.b16 %v1275
        %v1494 = vunpack.c.l.b16 %v1276
        %v1495 = vunpack.c.h.b16 %v1276
        %v1496 = vunpack.c.l.b16 %v1277
        %v1497 = vunpack.c.h.b16 %v1277
        %v1498 = vunpack.c.l.b16 %v1278
        %v1499 = vunpack.c.h.b16 %v1278
        %v1500 = vunpack.c.l.b16 %v1279
        %v1501 = vunpack.c.h.b16 %v1279
        %v1502 = vunpack.c.l.b16 %v1280
        %v1503 = vunpack.c.h.b16 %v1280
        %v1504 = vunpack.c.l.b16 %v1281
        %v1505 = vunpack.c.h.b16 %v1281
        %v1506 = vunpack.c.l.b16 %v1282
        %v1507 = vunpack.c.h.b16 %v1282
        %v1508 = vunpack.c.l.b16 %v1283
        %v1509 = vunpack.c.h.b16 %v1283
        %v1510 = vunpack.c.l.b16 %v1284
        %v1511 = vunpack.c.h.b16 %v1284
        %v1512 = vunpack.c.l.b16 %v1285
        %v1513 = vunpack.c.h.b16 %v1285
        %v1514 = vunpack.c.l.b16 %v1286
        %v1515 = vunpack.c.h.b16 %v1286
        %v1516 = vunpack.c.l.b16 %v1287
        %v1517 = vunpack.c.h.b16 %v1287
        %v1518 = vunpack.c.l.b16 %v1288
        %v1519 = vunpack.c.h.b16 %v1288
        %v1520 = vunpack.c.l.b16 %v1289
        %v1521 = vunpack.c.h.b16 %v1289
        %v1522 = vunpack.c.l.b16 %v1290
        %v1523 = vunpack.c.h.b16 %v1290
        %v1524 = vunpack.c.l.b16 %v1291
        %v1525 = vunpack.c.h.b16 %v1291
        %v1526 = vpack.c.b16 %v1406, %v1398
        %v1527 = vpack.c.b16 %v1407, %v1399
        %v1528 = vpack.c.b16 %v1408, %v1400
        %v1529 = vpack.c.b16 %v1409, %v1401
        %v1530 = vpack.c.b16 %v1410, %v1402
        %v1531 = vpack.c.b16 %v1411, %v1403
        %v1532 = vpack.c.b16 %v1412, %v1404
        %v1533 = vpack.c.b16 %v1413, %v1405
        %v1534 = vpack.c.b16 %v1422, %v1414
        %v1535 = vpack.c.b16 %v1423, %v1415
        %v1536 = vpack.c.b16 %v1424, %v1416
        %v1537 = vpack.c.b16 %v1425, %v1417
        %v1538 = vpack.c.b16 %v1426, %v1418
        %v1539 = vpack.c.b16 %v1427, %v1419
        %v1540 = vpack.c.b16 %v1428, %v1420
        %v1541 = vpack.c.b16 %v1429, %v1421
        %v1542 = vpack.c.b16 %v1438, %v1430
        %v1543 = vpack.c.b16 %v1439, %v1431
        %v1544 = vpack.c.b16 %v1440, %v1432
        %v1545 = vpack.c.b16 %v1441, %v1433
        %v1546 = vpack.c.b16 %v1442, %v1434
        %v1547 = vpack.c.b16 %v1443, %v1435
        %v1548 = vpack.c.b16 %v1444, %v1436
        %v1549 = vpack.c.b16 %v1445, %v1437
        %v1550 = vpack.c.b16 %v1454, %v1446
        %v1551 = vpack.c.b16 %v1455, %v1447
        %v1552 = vpack.c.b16 %v1456, %v1448
        %v1553 = vpack.c.b16 %v1457, %v1449
        %v1554 = vpack.c.b16 %v1458, %v1450
        %v1555 = vpack.c.b16 %v1459, %v1451
        %v1556 = vpack.c.b16 %v1460, %v1452
        %v1557 = vpack.c.b16 %v1461, %v1453
        %v1558 = vpack.c.b16 %v1470, %v1462
        %v1559 = vpack.c.b16 %v1471, %v1463
        %v1560 = vpack.c.b16 %v1472, %v1464
        %v1561 = vpack.c.b16 %v1473, %v1465
        %v1562 = vpack.c.b16 %v1474, %v1466
        %v1563 = vpack.c.b16 %v1475, %v1467
        %v1564 = vpack.c.b16 %v1476, %v1468
        %v1565 = vpack.c.b16 %v1477, %v1469
        %v1566 = vpack.c.b16 %v1486, %v1478
        %v1567 = vpack.c.b16 %v1487, %v1479
        %v1568 = vpack.c.b16 %v1488, %v1480
        %v1569 = vpack.c.b16 %v1489, %v1481
        %v1570 = vpack.c.b16 %v1490, %v1482
        %v1571 = vpack.c.b16 %v1491, %v1483
        %v1572 = vpack.c.b16 %v1492, %v1484
        %v1573 = vpack.c.b16 %v1493, %v1485
        %v1574 = vpack.c.b16 %v1502, %v1494
        %v1575 = vpack.c.b16 %v1503, %v1495
        %v1576 = vpack.c.b16 %v1504, %v1496
        %v1577 = vpack.c.b16 %v1505, %v1497
        %v1578 = vpack.c.b16 %v1506, %v1498
        %v1579 = vpack.c.b16 %v1507, %v1499
        %v1580 = vpack.c.b16 %v1508, %v1500
        %v1581 = vpack.c.b16 %v1509, %v1501
        %v1582 = vpack.c.b16 %v1518, %v1510
        %v1583 = vpack.c.b16 %v1519, %v1511
        %v1584 = vpack.c.b16 %v1520, %v1512
        %v1585 = vpack.c.b16 %v1521, %v1513
        %v1586 = vpack.c.b16 %v1522, %v1514
        %v1587 = vpack.c.b16 %v1523, %v1515
        %v1588 = vpack.c.b16 %v1524, %v1516
        %v1589 = vpack.c.b16 %v1525, %v1517
        %1654 = vmatprep.subr.bf16.mxu0 %v1527
        %1655 = vmatpush1.bf16.msra.mxu0 %v1526
        %1656 = vmatprep.subr.bf16.mxu0 %v1535
        %1657 = vmatpush1.bf16.msra.mxu0 %v1534
        %1658 = vmatprep.subr.bf16.mxu0 %v1543
        %1659 = vmatpush1.bf16.msra.mxu0 %v1542
        %1660 = vmatprep.subr.bf16.mxu0 %v1551
        %1661 = vmatpush1.bf16.msra.mxu0 %v1550
        %1662 = vmatprep.subr.bf16.mxu0 %v1559
        %1663 = vmatpush1.bf16.msra.mxu0 %v1558
        %1664 = vmatprep.subr.bf16.mxu0 %v1567
        %1665 = vmatpush1.bf16.msra.mxu0 %v1566
        %1666 = vmatprep.subr.bf16.mxu0 %v1575
        %1667 = vmatpush1.bf16.msra.mxu0 %v1574
        %1668 = vmatprep.subr.bf16.mxu0 %v1583
        %1669 = vmatpush1.bf16.msra.mxu0 %v1582
        %1670 = vmatprep.subr.bf16.mxu0 0
        %1671 = vmatpush1.bf16.msra.mxu0 0
        %1672 = vmatprep.subr.bf16.mxu0 0
        %1673 = vmatpush1.bf16.msra.mxu0 0
        %1674 = vmatprep.subr.bf16.mxu0 0
        %1675 = vmatpush1.bf16.msra.mxu0 0
        %1676 = vmatprep.subr.bf16.mxu0 0
        %1677 = vmatpush1.bf16.msra.mxu0 0
        %1678 = vmatprep.subr.bf16.mxu0 0
        %1679 = vmatpush1.bf16.msra.mxu0 0
        %1680 = vmatprep.subr.bf16.mxu0 0
        %1681 = vmatpush1.bf16.msra.mxu0 0
        %1682 = vmatprep.subr.bf16.mxu0 0
        %1683 = vmatpush1.bf16.msra.mxu0 0
        %1684 = vmatprep.subr.bf16.mxu0 0
        %1685 = vmatpush1.bf16.msra.mxu0 0
        %1686 = vmatprep.mubr.bf16.mxu0 0
        %1687 = vmatmul.mubr.bf16.gmra.mrb[0].mxu0 %v1219
        %v1688 = vpop.f32.mrb[0].mxu0
        %v1689 = vadd.f32 %v1297, %v1688
        %v1690 = vpop.f32.mrb[0].mxu0
        %v1691 = vadd.f32 %v1301, %v1690
        %v1692 = vpop.f32.mrb[0].mxu0
        %v1693 = vpop.f32.mrb[0].mxu0
        %1694 = vdwg.mxu0
        %1695 = vmatprep.subr.bf16.mxu0 %v1529
        %1696 = vmatpush1.bf16.msra.mxu0 %v1528
        %1697 = vmatprep.subr.bf16.mxu0 %v1537
        %1698 = vmatpush1.bf16.msra.mxu0 %v1536
        %1699 = vmatprep.subr.bf16.mxu0 %v1545
        %1700 = vmatpush1.bf16.msra.mxu0 %v1544
        %1701 = vmatprep.subr.bf16.mxu0 %v1553
        %1702 = vmatpush1.bf16.msra.mxu0 %v1552
        %1703 = vmatprep.subr.bf16.mxu0 %v1561
        %1704 = vmatpush1.bf16.msra.mxu0 %v1560
        %1705 = vmatprep.subr.bf16.mxu0 %v1569
        %1706 = vmatpush1.bf16.msra.mxu0 %v1568
        %1707 = vmatprep.subr.bf16.mxu0 %v1577
        %1708 = vmatpush1.bf16.msra.mxu0 %v1576
        %1709 = vmatprep.subr.bf16.mxu0 %v1585
        %1710 = vmatpush1.bf16.msra.mxu0 %v1584
        %1711 = vmatprep.subr.bf16.mxu0 0
        %1712 = vmatpush1.bf16.msra.mxu0 0
        %1713 = vmatprep.subr.bf16.mxu0 0
        %1714 = vmatpush1.bf16.msra.mxu0 0
        %1715 = vmatprep.subr.bf16.mxu0 0
        %1716 = vmatpush1.bf16.msra.mxu0 0
        %1717 = vmatprep.subr.bf16.mxu0 0
        %1718 = vmatpush1.bf16.msra.mxu0 0
        %1719 = vmatprep.subr.bf16.mxu0 0
        %1720 = vmatpush1.bf16.msra.mxu0 0
        %1721 = vmatprep.subr.bf16.mxu0 0
        %1722 = vmatpush1.bf16.msra.mxu0 0
        %1723 = vmatprep.subr.bf16.mxu0 0
        %1724 = vmatpush1.bf16.msra.mxu0 0
        %1725 = vmatprep.subr.bf16.mxu0 0
        %1726 = vmatpush1.bf16.msra.mxu0 0
        %1727 = vmatprep.mubr.bf16.mxu0 0
        %1728 = vmatmul.mubr.bf16.gmra.mrb[0].mxu0 %v1219
        %v1729 = vpop.f32.mrb[0].mxu0
        %v1730 = vadd.f32 %v1305, %v1729
        %v1731 = vpop.f32.mrb[0].mxu0
        %v1732 = vadd.f32 %v1309, %v1731
        %v1733 = vpop.f32.mrb[0].mxu0
        %v1734 = vpop.f32.mrb[0].mxu0
        %1735 = vdwg.mxu0
        %1736 = vmatprep.subr.bf16.mxu0 %v1531
        %1737 = vmatpush1.bf16.msra.mxu0 %v1530
        %1738 = vmatprep.subr.bf16.mxu0 %v1539
        %1739 = vmatpush1.bf16.msra.mxu0 %v1538
        %1740 = vmatprep.subr.bf16.mxu0 %v1547
        %1741 = vmatpush1.bf16.msra.mxu0 %v1546
        %1742 = vmatprep.subr.bf16.mxu0 %v1555
        %1743 = vmatpush1.bf16.msra.mxu0 %v1554
        %1744 = vmatprep.subr.bf16.mxu0 %v1563
        %1745 = vmatpush1.bf16.msra.mxu0 %v1562
        %1746 = vmatprep.subr.bf16.mxu0 %v1571
        %1747 = vmatpush1.bf16.msra.mxu0 %v1570
        %1748 = vmatprep.subr.bf16.mxu0 %v1579
        %1749 = vmatpush1.bf16.msra.mxu0 %v1578
        %1750 = vmatprep.subr.bf16.mxu0 %v1587
        %1751 = vmatpush1.bf16.msra.mxu0 %v1586
        %1752 = vmatprep.subr.bf16.mxu0 0
        %1753 = vmatpush1.bf16.msra.mxu0 0
        %1754 = vmatprep.subr.bf16.mxu0 0
        %1755 = vmatpush1.bf16.msra.mxu0 0
        %1756 = vmatprep.subr.bf16.mxu0 0
        %1757 = vmatpush1.bf16.msra.mxu0 0
        %1758 = vmatprep.subr.bf16.mxu0 0
        %1759 = vmatpush1.bf16.msra.mxu0 0
        %1760 = vmatprep.subr.bf16.mxu0 0
        %1761 = vmatpush1.bf16.msra.mxu0 0
        %1762 = vmatprep.subr.bf16.mxu0 0
        %1763 = vmatpush1.bf16.msra.mxu0 0
        %1764 = vmatprep.subr.bf16.mxu0 0
        %1765 = vmatpush1.bf16.msra.mxu0 0
        %1766 = vmatprep.subr.bf16.mxu0 0
        %1767 = vmatpush1.bf16.msra.mxu0 0
        %1768 = vmatprep.mubr.bf16.mxu0 0
        %1769 = vmatmul.mubr.bf16.gmra.mrb[0].mxu0 %v1219
        %v1770 = vpop.f32.mrb[0].mxu0
        %v1771 = vadd.f32 %v1313, %v1770
        %v1772 = vpop.f32.mrb[0].mxu0
        %v1773 = vadd.f32 %v1317, %v1772
        %v1774 = vpop.f32.mrb[0].mxu0
        %v1775 = vpop.f32.mrb[0].mxu0
        %1776 = vdwg.mxu0
        %1777 = vmatprep.subr.bf16.mxu0 %v1533
        %1778 = vmatpush1.bf16.msra.mxu0 %v1532
        %1779 = vmatprep.subr.bf16.mxu0 %v1541
        %1780 = vmatpush1.bf16.msra.mxu0 %v1540
        %1781 = vmatprep.subr.bf16.mxu0 %v1549
        %1782 = vmatpush1.bf16.msra.mxu0 %v1548
        %1783 = vmatprep.subr.bf16.mxu0 %v1557
        %1784 = vmatpush1.bf16.msra.mxu0 %v1556
        %1785 = vmatprep.subr.bf16.mxu0 %v1565
        %1786 = vmatpush1.bf16.msra.mxu0 %v1564
        %1787 = vmatprep.subr.bf16.mxu0 %v1573
        %1788 = vmatpush1.bf16.msra.mxu0 %v1572
        %1789 = vmatprep.subr.bf16.mxu0 %v1581
        %1790 = vmatpush1.bf16.msra.mxu0 %v1580
        %1791 = vmatprep.subr.bf16.mxu0 %v1589
        %1792 = vmatpush1.bf16.msra.mxu0 %v1588
        %1793 = vmatprep.subr.bf16.mxu0 0
        %1794 = vmatpush1.bf16.msra.mxu0 0
        %1795 = vmatprep.subr.bf16.mxu0 0
        %1796 = vmatpush1.bf16.msra.mxu0 0
        %1797 = vmatprep.subr.bf16.mxu0 0
        %1798 = vmatpush1.bf16.msra.mxu0 0
        %1799 = vmatprep.subr.bf16.mxu0 0
        %1800 = vmatpush1.bf16.msra.mxu0 0
        %1801 = vmatprep.subr.bf16.mxu0 0
        %1802 = vmatpush1.bf16.msra.mxu0 0
        %1803 = vmatprep.subr.bf16.mxu0 0
        %1804 = vmatpush1.bf16.msra.mxu0 0
        %1805 = vmatprep.subr.bf16.mxu0 0
        %1806 = vmatpush1.bf16.msra.mxu0 0
        %1807 = vmatprep.subr.bf16.mxu0 0
        %1808 = vmatpush1.bf16.msra.mxu0 0
        %1809 = vmatprep.mubr.bf16.mxu0 0
        %1810 = vmatmul.mubr.bf16.gmra.mrb[0].mxu0 %v1219
        %v1811 = vpop.f32.mrb[0].mxu0
        %v1812 = vadd.f32 %v1321, %v1811
        %v1813 = vpop.f32.mrb[0].mxu0
        %v1814 = vadd.f32 %v1325, %v1813
        %v1815 = vpop.f32.mrb[0].mxu0
        %v1816 = vpop.f32.mrb[0].mxu0
        %1817 = vdwg.mxu0
        %v1818 = vpack.c.bf16 %v1689, %v1689
        %v1819 = vpack.c.bf16 %v1691, %v1691
        %v1820 = vpack.c.bf16 %v1730, %v1730
        %v1821 = vpack.c.bf16 %v1732, %v1732
        %v1822 = vpack.c.bf16 %v1771, %v1771
        %v1823 = vpack.c.bf16 %v1773, %v1773
        %v1824 = vpack.c.bf16 %v1812, %v1812
        %v1825 = vpack.c.bf16 %v1814, %v1814
        %v1834 = vcombine.low %v1818, %v1819
        %v1835 = vcombine.low %v1820, %v1821
        %v1836 = vcombine.low %v1822, %v1823
        %v1837 = vcombine.low %v1824, %v1825
        %v1839 = vunpack.c.l.s4 1966171168
        %v1840 = vunpack.c.0.s8 %v1839
        %v1841 = vlaneseq
        %v1842 = vshrl.u32 %v1841, 7
        %v1843 = vsub.s32 %v1840, %v1842
        %v1844 = vrot.slane %v1834, %v1843
        %v1846 = vunpack.c.l.s4 1966171168
        %v1847 = vunpack.c.0.s8 %v1846
        %v1848 = vlaneseq
        %v1849 = vshrl.u32 %v1848, 7
        %v1850 = vsub.s32 %v1847, %v1849
        %v1851 = vrot.slane %v1835, %v1850
        %v1853 = vunpack.c.l.s4 1966171168
        %v1854 = vunpack.c.0.s8 %v1853
        %v1855 = vlaneseq
        %v1856 = vshrl.u32 %v1855, 7
        %v1857 = vsub.s32 %v1854, %v1856
        %v1858 = vrot.slane %v1836, %v1857
        %v1860 = vunpack.c.l.s4 1966171168
        %v1861 = vunpack.c.0.s8 %v1860
        %v1862 = vlaneseq
        %v1863 = vshrl.u32 %v1862, 7
        %v1864 = vsub.s32 %v1861, %v1863
        %v1865 = vrot.slane %v1837, %v1864
        %v1866 = vcombine.low %v1844, %v1851
        %v1867 = vcombine.high %v1844, %v1851
        %v1868 = vcombine.low %v1858, %v1865
        %v1869 = vcombine.high %v1858, %v1865
        %v1871 = vunpack.c.l.s4 1966171168
        %v1872 = vunpack.c.0.s8 %v1871
        %v1873 = vlaneseq
        %v1874 = vshrl.u32 %v1873, 7
        %v1875 = vsub.s32 %v1872, %v1874
        %v1876 = vrot.slane %v1866, %v1875
        %v1878 = vunpack.c.l.s4 1966171168
        %v1879 = vunpack.c.0.s8 %v1878
        %v1880 = vlaneseq
        %v1881 = vshrl.u32 %v1880, 7
        %v1882 = vsub.s32 %v1879, %v1881
        %v1883 = vrot.slane %v1867, %v1882
        %v1885 = vunpack.c.l.s4 1966171168
        %v1886 = vunpack.c.0.s8 %v1885
        %v1887 = vlaneseq
        %v1888 = vshrl.u32 %v1887, 7
        %v1889 = vsub.s32 %v1886, %v1888
        %v1890 = vrot.slane %v1868, %v1889
        %v1892 = vunpack.c.l.s4 1966171168
        %v1893 = vunpack.c.0.s8 %v1892
        %v1894 = vlaneseq
        %v1895 = vshrl.u32 %v1894, 7
        %v1896 = vsub.s32 %v1893, %v1895
        %v1897 = vrot.slane %v1869, %v1896
        %v1898 = vcombine.low %v1876, %v1890
        %v1899 = vcombine.high %v1876, %v1890
        %v1900 = vcombine.low %v1883, %v1897
        %v1901 = vcombine.high %v1883, %v1897
        %v1902 = vunpack.c.l.b16 %v1898
        %v1903 = vunpack.c.h.b16 %v1898
        %v1904 = vpack.i.b16 %v1903, %v1902
        %v1905 = vunpack.c.l.b16 %v1904
        %v1906 = vunpack.c.h.b16 %v1904
        %v1907 = vpack.i.b16 %v1906, %v1905
        %v1908 = vunpack.c.l.b16 %v1907
        %v1909 = vunpack.c.h.b16 %v1907
        %v1910 = vpack.i.b16 %v1909, %v1908
        %v1912 = vunpack.c.l.b16 %v1900
        %v1913 = vunpack.c.h.b16 %v1900
        %v1914 = vpack.i.b16 %v1913, %v1912
        %v1915 = vunpack.c.l.b16 %v1914
        %v1916 = vunpack.c.h.b16 %v1914
        %v1917 = vpack.i.b16 %v1916, %v1915
        %v1918 = vunpack.c.l.b16 %v1917
        %v1919 = vunpack.c.h.b16 %v1917
        %v1920 = vpack.i.b16 %v1919, %v1918
        %v1922 = vunpack.c.l.b16 %v1899
        %v1923 = vunpack.c.h.b16 %v1899
        %v1924 = vpack.i.b16 %v1923, %v1922
        %v1925 = vunpack.c.l.b16 %v1924
        %v1926 = vunpack.c.h.b16 %v1924
        %v1927 = vpack.i.b16 %v1926, %v1925
        %v1928 = vunpack.c.l.b16 %v1927
        %v1929 = vunpack.c.h.b16 %v1927
        %v1930 = vpack.i.b16 %v1929, %v1928
        %v1932 = vunpack.c.l.b16 %v1901
        %v1933 = vunpack.c.h.b16 %v1901
        %v1934 = vpack.i.b16 %v1933, %v1932
        %v1935 = vunpack.c.l.b16 %v1934
        %v1936 = vunpack.c.h.b16 %v1934
        %v1937 = vpack.i.b16 %v1936, %v1935
        %v1938 = vunpack.c.l.b16 %v1937
        %v1939 = vunpack.c.h.b16 %v1937
        %v1940 = vpack.i.b16 %v1939, %v1938
        %1942 = vmatprep.subr.bf16.mxu0 0
        %1943 = vmatpush1.bf16.xpose.msra.mxu0 %v1220
        %1944 = vmatprep.subr.bf16.mxu0 0
        %1945 = vmatpush1.bf16.xpose.msra.mxu0 %v1221
        %1946 = vmatprep.subr.bf16.mxu0 0
        %1947 = vmatpush1.bf16.xpose.msra.mxu0 %v1222
        %1948 = vmatprep.subr.bf16.mxu0 0
        %1949 = vmatpush1.bf16.xpose.msra.mxu0 %v1223
        %1950 = vmatprep.subr.bf16.mxu0 0
        %1951 = vmatpush1.bf16.xpose.msra.mxu0 %v1224
        %1952 = vmatprep.subr.bf16.mxu0 0
        %1953 = vmatpush1.bf16.xpose.msra.mxu0 %v1225
        %1954 = vmatprep.subr.bf16.mxu0 0
        %1955 = vmatpush1.bf16.xpose.msra.mxu0 %v1226
        %1956 = vmatprep.subr.bf16.mxu0 0
        %1957 = vmatpush1.bf16.xpose.msra.mxu0 %v1227
        %1958 = vmatprep.subr.bf16.mxu0 0
        %1959 = vmatpush1.bf16.xpose.msra.mxu0 0
        %1960 = vmatprep.subr.bf16.mxu0 0
        %1961 = vmatpush1.bf16.xpose.msra.mxu0 0
        %1962 = vmatprep.subr.bf16.mxu0 0
        %1963 = vmatpush1.bf16.xpose.msra.mxu0 0
        %1964 = vmatprep.subr.bf16.mxu0 0
        %1965 = vmatpush1.bf16.xpose.msra.mxu0 0
        %1966 = vmatprep.subr.bf16.mxu0 0
        %1967 = vmatpush1.bf16.xpose.msra.mxu0 0
        %1968 = vmatprep.subr.bf16.mxu0 0
        %1969 = vmatpush1.bf16.xpose.msra.mxu0 0
        %1970 = vmatprep.subr.bf16.mxu0 0
        %1971 = vmatpush1.bf16.xpose.msra.mxu0 0
        %1972 = vmatprep.subr.bf16.mxu0 0
        %1973 = vmatpush1.bf16.xpose.msra.mxu0 0
        %1974 = vmatprep.mubr.bf16.mxu0 0
        %1975 = vmatmul.mubr.bf16.gmra.mrb[0].mxu0 %v1910
        %v1976 = vpop.f32.mrb[0].mxu0
        %v1977 = vadd.f32 0.0, %v1976
        %v1978 = vpop.f32.mrb[0].mxu0
        %v1979 = vpop.f32.mrb[0].mxu0
        %v1980 = vadd.f32 0.0, %v1979
        %v1981 = vpop.f32.mrb[0].mxu0
        %1982 = vmatprep.mubr.bf16.mxu0 0
        %1983 = vmatmul.mubr.bf16.gmra.mrb[0].mxu0 %v1920
        %v1984 = vpop.f32.mrb[0].mxu0
        %v1985 = vadd.f32 0.0, %v1984
        %v1986 = vpop.f32.mrb[0].mxu0
        %v1987 = vpop.f32.mrb[0].mxu0
        %v1988 = vadd.f32 0.0, %v1987
        %v1989 = vpop.f32.mrb[0].mxu0
        %1990 = vmatprep.mubr.bf16.mxu0 0
        %1991 = vmatmul.mubr.bf16.gmra.mrb[0].mxu0 %v1930
        %v1992 = vpop.f32.mrb[0].mxu0
        %v1993 = vadd.f32 0.0, %v1992
        %v1994 = vpop.f32.mrb[0].mxu0
        %v1995 = vpop.f32.mrb[0].mxu0
        %v1996 = vadd.f32 0.0, %v1995
        %v1997 = vpop.f32.mrb[0].mxu0
        %1998 = vmatprep.mubr.bf16.mxu0 0
        %1999 = vmatmul.mubr.bf16.gmra.mrb[0].mxu0 %v1940
        %v2000 = vpop.f32.mrb[0].mxu0
        %v2001 = vadd.f32 0.0, %v2000
        %v2002 = vpop.f32.mrb[0].mxu0
        %v2003 = vpop.f32.mrb[0].mxu0
        %v2004 = vadd.f32 0.0, %v2003
        %v2005 = vpop.f32.mrb[0].mxu0
        %2006 = vdwg.mxu0
        %v2007 = vpack.c.bf16 %v1977, %v1977
        %v2008 = vpack.c.bf16 %v1980, %v1980
        %v2009 = vpack.c.bf16 %v1985, %v1985
        %v2010 = vpack.c.bf16 %v1988, %v1988
        %v2011 = vpack.c.bf16 %v1993, %v1993
        %v2012 = vpack.c.bf16 %v1996, %v1996
        %v2013 = vpack.c.bf16 %v2001, %v2001
        %v2014 = vpack.c.bf16 %v2004, %v2004
        %2015 = vst [vmem:[%s418] sm:$0xf] %v2007
        %2016 = vst [vmem:[%s418 + $0x4] sm:$0xf] %v2008
        %2017 = vst [vmem:[%s418 + $0x8] sm:$0xf] %v2009
        %2018 = vst [vmem:[%s418 + $0xc] sm:$0xf] %v2010
        %2019 = vst [vmem:[%s418 + $0x10] sm:$0xf] %v2011
        %2020 = vst [vmem:[%s418 + $0x14] sm:$0xf] %v2012
        %2021 = vst [vmem:[%s418 + $0x18] sm:$0xf] %v2013
        %2022 = vst [vmem:[%s418 + $0x1c] sm:$0xf] %v2014
        %s2023 = sand.u32 %s232, 1
        %s2024 = scalar_lea.sflag [#allocation4], %s2023
        %s2025 = sand.u32 %s232, 1
        %s2026 = smul.addr %s2025, 8
        %s2027 = scalar_lea.vmem [#allocation3], %s2026
        %p2028 = scmp.lt.s32.totalorder %s28, 1
        %s2029 = scalar_select %p2028, %s28, 1
        %p2030 = scmp.lt.s32.totalorder %s29, 0
        %s2031 = scalar_select %p2030, %s29, 0
        %s2032 = smul.addr %s2029, 8
        %s2033 = sadd.s32 %s2031, %s2032
        %s2034 = smul.addr %s2033, 4
        %s2035 = scalar_lea.vmem %s9, %s2034
        // Predicated region
        $region57: #{biaffine_decoder_forward.1} parent=51 // pred_check
          %p2036 = pneg %p242
        $region58: #{biaffine_decoder_forward.1} parent=51 // pred_check_branch
          %2038 = sbr.rel (%p2036) target = $region60
        $region59: #{biaffine_decoder_forward.1} parent=51 // pred_region
          %s2040 = ssub.s32 128, 128
          %2041 = vsyncadd %s2024, %s2040
          %s2042 = smul.addr %s28, 128
          %s2043 = scalar_lea.hbm %s8, %s2042
          %s2045 = sshll.u32 %s2027, 4
          %s2046 = int_to_ptr.vmem [resolvable:$true] %s2045
          %2048 = dma.vmem_to_hbm [thread:$0]  %s2046, 128, %s2043, %s2024
        $region60: #{biaffine_decoder_forward.1} parent=51 // pred_fallthru
          _
        // Predicated region
        $region61: #{biaffine_decoder_forward.1} parent=51 // pred_check
          %p2049 = pneg %p270
        $region62: #{biaffine_decoder_forward.1} parent=51 // pred_check_branch
          %2051 = sbr.rel (%p2049) target = $region64
        $region63: #{biaffine_decoder_forward.1} parent=51 // pred_region
          _
        $region64: #{biaffine_decoder_forward.1} parent=51 // pred_fallthru
          _
      $region52: #{biaffine_decoder_forward.1} parent=5 // pred_fallthru
        _
      %p2052 = scmp.le.s32.totalorder 2, %s19
      // Predicated region
      $region65: #{biaffine_decoder_forward.1} parent=5 // pred_check
        %p2053 = pneg %p2052
      $region66: #{biaffine_decoder_forward.1} parent=5 // pred_check_branch
        %2055 = sbr.rel (%p2053) target = $region68
      $region67: #{biaffine_decoder_forward.1} parent=5 // pred_region
        %s2056 = ssub.s32 %s19, 2
        // Predicated region
        $region69: #{biaffine_decoder_forward.1} parent=67 // pred_check
          %p2057 = pneg %p248
        $region70: #{biaffine_decoder_forward.1} parent=67 // pred_check_branch
          %2059 = sbr.rel (%p2057) target = $region72
        $region71: #{biaffine_decoder_forward.1} parent=67 // pred_region
          %s2060 = sand.u32 %s233, 1
          %s2061 = scalar_lea.sflag [#allocation4], %s2060
          %s2062 = sand.u32 %s233, 1
          %s2063 = smul.addr %s2062, 8
          %s2064 = scalar_lea.vmem [#allocation3], %s2063
          %2065 = dma.done %s2061, 128
        $region72: #{biaffine_decoder_forward.1} parent=67 // pred_fallthru
          _
        // Predicated region
        $region73: #{biaffine_decoder_forward.1} parent=67 // pred_check
          %p2066 = pneg %p276
        $region74: #{biaffine_decoder_forward.1} parent=67 // pred_check_branch
          %2068 = sbr.rel (%p2066) target = $region76
        $region75: #{biaffine_decoder_forward.1} parent=67 // pred_region
          %p2069 = scmp.lt.s32.totalorder %s30, 1
          %s2070 = scalar_select %p2069, %s30, 1
          %p2071 = scmp.lt.s32.totalorder %s31, 0
          %s2072 = scalar_select %p2071, %s31, 0
          %s2073 = smul.addr %s2070, 8
          %s2074 = sadd.s32 %s2072, %s2073
          %s2075 = smul.addr %s2074, 4
          %s2076 = scalar_lea.vmem %s9, %s2075
        $region76: #{biaffine_decoder_forward.1} parent=67 // pred_fallthru
          _
      $region68: #{biaffine_decoder_forward.1} parent=5 // pred_fallthru
        _
    $region6: #{biaffine_decoder_forward.1} parent=1 // loop_footer
      %s23 = sadd.s32 1, %s19
    $region7: #{biaffine_decoder_forward.1} parent=1 // loop_footer_branch
      %18 = sbr.rel target = $region3
    $region8: #{biaffine_decoder_forward.1} parent=1 // loop_exit
      _
    %2077 = vsyncpa [#allocation4], 1
    %s2078 = scalar_lea.sflag [#allocation4], 1
    %2079 = vsyncpa %s2078, 1

</llo_original>
